<compile_context>
chip_gen: v6e
topology: v6e:2x2x1
jax: 0.10.0
libtpu: 0.0.40
codegen_flags: <defaults>
</compile_context>

<pallas_src>
import functools

import jax
import jax.numpy as jnp
from jax import lax
from jax.experimental import pallas as pl
from jax.experimental.pallas import tpu as pltpu

N_CLASSES = 18
HPARAMS = {
    "num_hidden_layers": 0,
    "num_node_features": 86,
    "num_relations": 4,
    "num_bases": 30,
    "hidden_dim": 56,
    "dropout": 0.2,
    "aggr": "mean",
    "pooling": "mean",
}

LANE = 128
SUBLANE = 8
SUBLANE_BF16 = 16  # bf16 packs 2 rows per sublane -> pad node dim to 16


def _round_up(v, m):
    return (v + m - 1) // m * m


def _pad2(a, rows, cols, value=0.0):
    r, c = a.shape
    return jnp.pad(a, ((0, rows - r), (0, cols - c)), constant_values=value)


# --------------------------------------------------------------------------- #
# Fused Pallas kernel
# --------------------------------------------------------------------------- #
def _rgcn_fused_kernel(
    x_ref, edges_ref, batch_ref, w_ref, vec_ref, o_ref,
    *, n_pad, e_pad, num_relations, fin_pad, h_pad, b_pad,
):
    R = num_relations

    # ---- relational adjacency counts, built in-kernel from edge lists ---- #
    src = edges_ref[0:1, :]                       # (1, E) int32, pads = -1
    dst = edges_ref[1:2, :]
    etype = edges_ref[2:3, :]
    row_id = etype * n_pad + dst                  # (1, E); padded edges < 0
    rows_iota = lax.broadcasted_iota(jnp.int32, (R * n_pad, e_pad), 0)
    cols_iota = lax.broadcasted_iota(jnp.int32, (n_pad, e_pad), 0)
    oh_rows = (rows_iota == row_id).astype(jnp.bfloat16)    # (R*Np, E)
    oh_cols = (cols_iota == src).astype(jnp.bfloat16)       # (Np,   E)
    # counts[r*Np+i, j] = #edges j->i of type r   (A @ B^T form on the MXU)
    counts = lax.dot_general(oh_rows, oh_cols, (((1,), (1,)), ((), ())),
                             preferred_element_type=jnp.float32)  # (R*Np, Np)
    inv_deg = 1.0 / jnp.maximum(counts.sum(axis=1, keepdims=True), 1.0)
    counts_bf = counts.astype(jnp.bfloat16)       # exact small integers

    # ---- pooling one-hot (graphs x nodes), built in-kernel --------------- #
    batch = batch_ref[0:1, :]                     # (1, Np) int32, pads = -1
    g_iota = lax.broadcasted_iota(jnp.int32, (b_pad, n_pad), 0)
    oh_pool = (g_iota == batch).astype(jnp.float32)          # (Bp, Np)
    inv_cnt = 1.0 / jnp.maximum(oh_pool.sum(axis=1, keepdims=True), 1.0)
    oh_pool_bf = oh_pool.astype(jnp.bfloat16)

    # static offsets into the packed bf16 weight slab
    sz1 = (R + 1) * fin_pad
    sz2 = (R + 1) * h_pad
    off2 = sz1
    off_fc1 = off2 + sz2
    off_fc2 = off_fc1 + h_pad

    # packed (8, 128) f32 bias / BN vectors
    b1 = vec_ref[0:1, :]
    b2 = vec_ref[1:2, :]
    bn_scale = vec_ref[2:3, :]
    bn_shift = vec_ref[3:4, :]
    fc1b = vec_ref[4:5, :]
    fc2b = vec_ref[5:6, :]

    def conv(x_f32, w_off, w_rows, bias):
        x_bf = x_f32.astype(jnp.bfloat16)
        # all relational aggregations in one MXU push, normalised in f32
        h_stack = jnp.dot(counts_bf, x_bf,
                          preferred_element_type=jnp.float32)      # (R*Np, F)
        h_norm = h_stack * inv_deg
        parts = [x_bf] + [h_norm[r * n_pad:(r + 1) * n_pad].astype(jnp.bfloat16)
                          for r in range(R)]
        h_cat = jnp.concatenate(parts, axis=1)                     # (Np, (R+1)*F)
        # root + per-relation weights folded into ONE (Np,(R+1)F)@((R+1)F,H) push
        w = w_ref[w_off:w_off + w_rows, :]
        return jnp.dot(h_cat, w, preferred_element_type=jnp.float32) + bias

    # conv1 + ReLU, conv2
    x1 = jnp.maximum(conv(x_ref[...], 0, sz1, b1), 0.0)
    x2 = conv(x1, off2, sz2, b2)

    # global mean pool (bf16 one-hot, f32 acc, f32 1/count)
    g = jnp.dot(oh_pool_bf, x2.astype(jnp.bfloat16),
                preferred_element_type=jnp.float32) * inv_cnt
    # BatchNorm1d (eval) folded into scale/shift (f32)
    g = g * bn_scale + bn_shift
    # fc1 + ReLU (dropout is identity in eval mode)
    h = jnp.dot(g.astype(jnp.bfloat16), w_ref[off_fc1:off_fc1 + h_pad, :],
                preferred_element_type=jnp.float32) + fc1b
    h = jnp.maximum(h, 0.0)
    # fc2 (padded class columns carry a -1e30 bias -> exp underflows to 0)
    logits = jnp.dot(h.astype(jnp.bfloat16), w_ref[off_fc2:off_fc2 + h_pad, :],
                     preferred_element_type=jnp.float32) + fc2b
    # log_softmax over the padded 128-lane class axis (f32)
    m = jnp.max(logits, axis=1, keepdims=True)
    lse = jnp.log(jnp.sum(jnp.exp(logits - m), axis=1, keepdims=True)) + m
    o_ref[...] = (logits - lse).astype(o_ref.dtype)


def rgcn_fused(x_p, edges, batch_p, w_slab, vecs, *,
               n_pad, e_pad, num_relations, fin_pad, h_pad, b_pad, cost):
    slab_cols = w_slab.shape[1]
    kernel = functools.partial(
        _rgcn_fused_kernel, n_pad=n_pad, e_pad=e_pad,
        num_relations=num_relations, fin_pad=fin_pad, h_pad=h_pad, b_pad=b_pad)
    return pl.pallas_call(
        kernel,
        out_shape=jax.ShapeDtypeStruct((b_pad, slab_cols), jnp.float32),
        in_specs=[pl.BlockSpec(memory_space=pltpu.MemorySpace.VMEM)
                  for _ in range(5)],
        out_specs=pl.BlockSpec(memory_space=pltpu.MemorySpace.VMEM),
        cost_estimate=cost,
    )(x_p, edges, batch_p, w_slab, vecs)


# --------------------------------------------------------------------------- #
# One-time parameter packing (hoisted out of the per-call forward)
# --------------------------------------------------------------------------- #
def pack_params(params, hp):
    fin = hp["num_node_features"]
    hdim = hp["hidden_dim"]
    R = hp["num_relations"]
    fin_pad = _round_up(fin, LANE)
    h_pad = _round_up(hdim, LANE)
    c_pad = _round_up(N_CLASSES, LANE)
    assert h_pad == c_pad, "kernel assumes a single 128-lane working width"
    cols = h_pad

    def conv_block(p, fi_pad):
        # [root ; W_r0 ; ... ; W_r(R-1)] stacked along rows -> one MXU operand
        blocks = [_pad2(p["root"], fi_pad, cols)]
        blocks += [_pad2(p["weight"][r], fi_pad, cols) for r in range(R)]
        return jnp.concatenate(blocks, axis=0)

    w_slab = jnp.concatenate([
        conv_block(params["first_conv"], fin_pad),
        conv_block(params["last_conv"], h_pad),
        _pad2(params["fc1_w"], h_pad, cols),
        _pad2(params["fc2_w"], h_pad, cols),
    ], axis=0).astype(jnp.bfloat16)

    eps = 1e-5  # BatchNorm1d eval-mode folding
    bn_scale = params["bn_gamma"] / jnp.sqrt(params["bn_var"] + eps)
    bn_shift = params["bn_beta"] - params["bn_mean"] * bn_scale
    vecs = jnp.concatenate([
        _pad2(params["first_conv"]["bias"], 1, cols),
        _pad2(params["last_conv"]["bias"], 1, cols),
        _pad2(bn_scale, 1, cols),
        _pad2(bn_shift, 1, cols),
        _pad2(params["fc1_b"], 1, cols),
        _pad2(params["fc2_b"], 1, cols, value=-1e30),
        jnp.zeros((2, cols), jnp.float32),
    ], axis=0)
    return {"w_slab": w_slab, "vecs": vecs}


def init_params(key, hp):
    fin = hp["num_node_features"]
    h = hp["hidden_dim"]
    r = hp["num_relations"]
    nb = hp["num_bases"]
    keys = jax.random.split(key, 16)
    k = iter(keys)

    def conv_params(fi, fo):
        bases = jax.random.normal(next(k), (nb, fi, fo), jnp.float32) * 0.1
        comp = jax.random.normal(next(k), (r, nb), jnp.float32) * 0.1
        weight = jnp.einsum("rb,bio->rio", comp, bases)  # basis decomposition
        root = jax.random.normal(next(k), (fi, fo), jnp.float32) * 0.1
        bias = jax.random.normal(next(k), (1, fo), jnp.float32) * 0.05
        return {"weight": weight, "root": root, "bias": bias}

    return {
        "first_conv": conv_params(fin, h),
        "last_conv": conv_params(h, h),
        "fc1_w": jax.random.normal(next(k), (h, h), jnp.float32) * 0.1,
        "fc1_b": jax.random.normal(next(k), (1, h), jnp.float32) * 0.05,
        "fc2_w": jax.random.normal(next(k), (h, N_CLASSES), jnp.float32) * 0.1,
        "fc2_b": jax.random.normal(next(k), (1, N_CLASSES), jnp.float32) * 0.05,
        "bn_gamma": 1.0 + 0.1 * jax.random.normal(next(k), (1, h), jnp.float32),
        "bn_beta": 0.05 * jax.random.normal(next(k), (1, h), jnp.float32),
        "bn_mean": 0.05 * jax.random.normal(next(k), (1, h), jnp.float32),
        "bn_var": jnp.ones((1, h), jnp.float32),
    }


# --------------------------------------------------------------------------- #
# Per-call forward: only pads x and packs the int32 structure vectors.
# --------------------------------------------------------------------------- #
def rgcn_forward(packed, x, edge_index, edge_type, batch, num_graphs, hp):
    # TODO(synk): num_hidden_layers > 0 (extra hidden RGCNConvs) not generated;
    # hparams fix it at 0.  Training-mode dropout / BN batch stats not implemented.
    num_nodes, fin = x.shape
    num_edges = edge_index.shape[1]
    R = hp["num_relations"]
    hdim = hp["hidden_dim"]

    fin_pad = _round_up(fin, LANE)
    h_pad = _round_up(hdim, LANE)
    n_pad = _round_up(num_nodes, SUBLANE_BF16)
    b_pad = _round_up(num_graphs, SUBLANE)
    e_pad = _round_up(max(num_edges, n_pad), LANE)
    slab_cols = packed["w_slab"].shape[1]

    x_p = _pad2(x, n_pad, fin_pad)

    def row(v, width):
        v = v.astype(jnp.int32)
        return jnp.pad(v, (0, width - v.shape[0]), constant_values=-1)

    edges = jnp.stack([row(edge_index[0], e_pad),
                       row(edge_index[1], e_pad),
                       row(edge_type, e_pad)], axis=0)          # (3, Ep) int32
    batch_p = row(batch, n_pad)[None, :]                        # (1, Np) int32

    flops = (2 * R * n_pad * n_pad * e_pad
             + 2 * R * n_pad * n_pad * fin_pad
             + 2 * n_pad * (R + 1) * fin_pad * h_pad
             + 2 * R * n_pad * n_pad * h_pad
             + 2 * n_pad * (R + 1) * h_pad * h_pad
             + 2 * b_pad * n_pad * h_pad
             + 2 * b_pad * h_pad * h_pad
             + 2 * b_pad * h_pad * slab_cols)
    bytes_accessed = (x_p.size * 4 + edges.size * 4 + batch_p.size * 4
                      + packed["w_slab"].size * 2 + packed["vecs"].size * 4
                      + b_pad * slab_cols * 4)
    cost = pl.CostEstimate(flops=flops,
                           transcendentals=b_pad * slab_cols + b_pad,
                           bytes_accessed=bytes_accessed)

    out = rgcn_fused(x_p, edges, batch_p, packed["w_slab"], packed["vecs"],
                     n_pad=n_pad, e_pad=e_pad, num_relations=R,
                     fin_pad=fin_pad, h_pad=h_pad, b_pad=b_pad, cost=cost)
    return out[:num_graphs, :N_CLASSES]


# --------------------------------------------------------------------------- #
# Pure-JAX reference (f32) for validation
# --------------------------------------------------------------------------- #
def rgcn_reference(params, x, edge_index, edge_type, batch, num_graphs, hp):
    n = x.shape[0]
    nrel = hp["num_relations"]
    src, dst = edge_index[0], edge_index[1]
    adj = jnp.zeros((nrel, n, n), jnp.float32).at[edge_type, dst, src].add(1.0)
    adj = adj / jnp.maximum(adj.sum(axis=2, keepdims=True), 1.0)

    def conv(xx, p):
        out = xx @ p["root"] + p["bias"]
        for r in range(nrel):
            out = out + (adj[r] @ xx) @ p["weight"][r]
        return out

    x1 = jax.nn.relu(conv(x, params["first_conv"]))
    x2 = conv(x1, params["last_conv"])
    pool = (batch[None, :] == jnp.arange(num_graphs)[:, None]).astype(jnp.float32)
    pool = pool / jnp.maximum(pool.sum(axis=1, keepdims=True), 1.0)
    g = pool @ x2
    g = ((g - params["bn_mean"]) / jnp.sqrt(params["bn_var"] + 1e-5)
         * params["bn_gamma"] + params["bn_beta"])
    h = jax.nn.relu(g @ params["fc1_w"] + params["fc1_b"])
    logits = h @ params["fc2_w"] + params["fc2_b"]
    return jax.nn.log_softmax(logits, axis=1)


# --------------------------------------------------------------------------- #
if __name__ == "__main__":
    hp = HPARAMS
    key = jax.random.PRNGKey(0)
    k_param, k_x, k_src, k_dst, k_et = jax.random.split(key, 5)

    num_nodes = 24
    num_edges = 64
    num_graphs = 3

    x = jax.random.normal(k_x, (num_nodes, hp["num_node_features"]), jnp.float32)
    src = jax.random.randint(k_src, (num_edges,), 0, num_nodes)
    dst = jax.random.randint(k_dst, (num_edges,), 0, num_nodes)
    edge_index = jnp.stack([src, dst], axis=0)
    edge_type = jax.random.randint(k_et, (num_edges,), 0, hp["num_relations"])
    batch = jnp.repeat(jnp.arange(num_graphs), num_nodes // num_graphs)

    params = init_params(k_param, hp)
    packed = jax.tree.map(jax.block_until_ready, pack_params(params, hp))  # one-time

    fwd = jax.jit(functools.partial(rgcn_forward, num_graphs=num_graphs, hp=hp))
    out = jax.block_until_ready(fwd(packed, x, edge_index, edge_type, batch))

    assert out.shape == (num_graphs, N_CLASSES)
    # log_softmax rows must exponentiate-sum to 1
    assert jnp.allclose(jnp.exp(out).sum(axis=1), 1.0, atol=1e-4)

    # Check against f32 pure-JAX reference (loose tolerance: bf16 MXU operands)
    ref = rgcn_reference(params, x, edge_index, edge_type, batch, num_graphs, hp)
    err = float(jnp.max(jnp.abs(out - ref)))
    assert err < 0.2, f"max |out - ref| = {err}"

    print("KERNEL_OK")
</pallas_src>

<mosaic_0001>
module attributes {stable_mosaic.version = 11 : i64} {
  func.func @_rgcn_fused_kernel(%arg0: memref<32x128xf32, #tpu.memory_space<vmem>>, %arg1: memref<3x128xi32, #tpu.memory_space<vmem>>, %arg2: memref<1x32xi32, #tpu.memory_space<vmem>>, %arg3: memref<1536x128xbf16, #tpu.memory_space<vmem>>, %arg4: memref<8x128xf32, #tpu.memory_space<vmem>>, %arg5: memref<8x128xf32, #tpu.memory_space<vmem>>) attributes {dimension_semantics = [], scalar_prefetch = 0 : i64, scratch_operands = 0 : i64, tpu.core_type = #tpu.core_type<tc>} {
    %c0 = arith.constant 0 : index
    %c0_0 = arith.constant 0 : index
    %0 = vector.load %arg1[%c0, %c0_0] : memref<3x128xi32, #tpu.memory_space<vmem>>, vector<1x128xi32>
    %c1 = arith.constant 1 : index
    %c0_1 = arith.constant 0 : index
    %1 = vector.load %arg1[%c1, %c0_1] : memref<3x128xi32, #tpu.memory_space<vmem>>, vector<1x128xi32>
    %c2 = arith.constant 2 : index
    %c0_2 = arith.constant 0 : index
    %2 = vector.load %arg1[%c2, %c0_2] : memref<3x128xi32, #tpu.memory_space<vmem>>, vector<1x128xi32>
    %c32_i32 = arith.constant 32 : i32
    %3 = vector.broadcast %c32_i32 : i32 to vector<1x128xi32>
    %4 = arith.muli %2, %3 : vector<1x128xi32>
    %5 = arith.addi %4, %1 : vector<1x128xi32>
    %6 = tpu.iota {dimensions = array<i32: 0>} : vector<128x128xi32>
    %7 = tpu.iota {dimensions = array<i32: 0>} : vector<32x128xi32>
    %8 = vector.broadcast %5 : vector<1x128xi32> to vector<128x128xi32>
    %9 = arith.cmpi eq, %6, %8 : vector<128x128xi32>
    %10 = arith.extui %9 : vector<128x128xi1> to vector<128x128xi32>
    %11 = arith.sitofp %10 : vector<128x128xi32> to vector<128x128xf32>
    %12 = arith.truncf %11 : vector<128x128xf32> to vector<128x128xbf16>
    %13 = vector.broadcast %0 : vector<1x128xi32> to vector<32x128xi32>
    %14 = arith.cmpi eq, %7, %13 : vector<32x128xi32>
    %15 = arith.extui %14 : vector<32x128xi1> to vector<32x128xi32>
    %16 = arith.sitofp %15 : vector<32x128xi32> to vector<32x128xf32>
    %17 = arith.truncf %16 : vector<32x128xf32> to vector<32x128xbf16>
    %cst = arith.constant dense<0.000000e+00> : vector<128x32xf32>
    %18 = tpu.matmul %12, %17, %cst {dimension_numbers = #tpu.dot_dimension_numbers<[1], [1], [0], [0], [0, 0, 1, 0], [], []>} : vector<128x128xbf16>, vector<32x128xbf16>, vector<128x32xf32> -> vector<128x32xf32>
    %cst_3 = arith.constant dense<0.000000e+00> : vector<128xf32>
    %19 = vector.multi_reduction <add>, %18, %cst_3 [1] : vector<128x32xf32> to vector<128xf32>
    %20 = vector.shape_cast %19 : vector<128xf32> to vector<128x1xf32>
    %cst_4 = arith.constant 1.000000e+00 : f32
    %21 = vector.broadcast %cst_4 : f32 to vector<128x1xf32>
    %22 = arith.maximumf %20, %21 : vector<128x1xf32>
    %cst_5 = arith.constant 1.000000e+00 : f32
    %23 = vector.broadcast %cst_5 : f32 to vector<128x1xf32>
    %24 = arith.divf %23, %22 : vector<128x1xf32>
    %25 = arith.truncf %18 : vector<128x32xf32> to vector<128x32xbf16>
    %c0_6 = arith.constant 0 : index
    %c0_7 = arith.constant 0 : index
    %26 = vector.load %arg2[%c0_6, %c0_7] : memref<1x32xi32, #tpu.memory_space<vmem>>, vector<1x32xi32>
    %27 = tpu.iota {dimensions = array<i32: 0>} : vector<8x32xi32>
    %28 = vector.broadcast %26 : vector<1x32xi32> to vector<8x32xi32>
    %29 = arith.cmpi eq, %27, %28 : vector<8x32xi32>
    %30 = arith.extui %29 : vector<8x32xi1> to vector<8x32xi32>
    %31 = arith.sitofp %30 : vector<8x32xi32> to vector<8x32xf32>
    %cst_8 = arith.constant dense<0.000000e+00> : vector<8xf32>
    %32 = vector.multi_reduction <add>, %31, %cst_8 [1] : vector<8x32xf32> to vector<8xf32>
    %33 = vector.shape_cast %32 : vector<8xf32> to vector<8x1xf32>
    %cst_9 = arith.constant 1.000000e+00 : f32
    %34 = vector.broadcast %cst_9 : f32 to vector<8x1xf32>
    %35 = arith.maximumf %33, %34 : vector<8x1xf32>
    %cst_10 = arith.constant 1.000000e+00 : f32
    %36 = vector.broadcast %cst_10 : f32 to vector<8x1xf32>
    %37 = arith.divf %36, %35 : vector<8x1xf32>
    %38 = arith.truncf %31 : vector<8x32xf32> to vector<8x32xbf16>
    %c0_11 = arith.constant 0 : index
    %c0_12 = arith.constant 0 : index
    %39 = vector.load %arg4[%c0_11, %c0_12] : memref<8x128xf32, #tpu.memory_space<vmem>>, vector<1x128xf32>
    %c1_13 = arith.constant 1 : index
    %c0_14 = arith.constant 0 : index
    %40 = vector.load %arg4[%c1_13, %c0_14] : memref<8x128xf32, #tpu.memory_space<vmem>>, vector<1x128xf32>
    %c2_15 = arith.constant 2 : index
    %c0_16 = arith.constant 0 : index
    %41 = vector.load %arg4[%c2_15, %c0_16] : memref<8x128xf32, #tpu.memory_space<vmem>>, vector<1x128xf32>
    %c3 = arith.constant 3 : index
    %c0_17 = arith.constant 0 : index
    %42 = vector.load %arg4[%c3, %c0_17] : memref<8x128xf32, #tpu.memory_space<vmem>>, vector<1x128xf32>
    %c4 = arith.constant 4 : index
    %c0_18 = arith.constant 0 : index
    %43 = vector.load %arg4[%c4, %c0_18] : memref<8x128xf32, #tpu.memory_space<vmem>>, vector<1x128xf32>
    %c5 = arith.constant 5 : index
    %c0_19 = arith.constant 0 : index
    %44 = vector.load %arg4[%c5, %c0_19] : memref<8x128xf32, #tpu.memory_space<vmem>>, vector<1x128xf32>
    %c0_20 = arith.constant 0 : index
    %c0_21 = arith.constant 0 : index
    %45 = vector.load %arg0[%c0_20, %c0_21] : memref<32x128xf32, #tpu.memory_space<vmem>>, vector<32x128xf32>
    %46 = arith.truncf %45 : vector<32x128xf32> to vector<32x128xbf16>
    %cst_22 = arith.constant dense<0.000000e+00> : vector<128x128xf32>
    %47 = tpu.matmul %25, %46, %cst_22 {dimension_numbers = #tpu.dot_dimension_numbers<[1], [0], [0], [1], [0, 0, 1, 1], [], []>} : vector<128x32xbf16>, vector<32x128xbf16>, vector<128x128xf32> -> vector<128x128xf32>
    %48 = vector.broadcast %24 : vector<128x1xf32> to vector<128x128xf32>
    %49 = arith.mulf %47, %48 : vector<128x128xf32>
    %50 = vector.extract_strided_slice %49 {offsets = [0, 0], sizes = [32, 128], strides = [1, 1]} : vector<128x128xf32> to vector<32x128xf32>
    %51 = arith.truncf %50 : vector<32x128xf32> to vector<32x128xbf16>
    %52 = vector.extract_strided_slice %49 {offsets = [32, 0], sizes = [32, 128], strides = [1, 1]} : vector<128x128xf32> to vector<32x128xf32>
    %53 = arith.truncf %52 : vector<32x128xf32> to vector<32x128xbf16>
    %54 = vector.extract_strided_slice %49 {offsets = [64, 0], sizes = [32, 128], strides = [1, 1]} : vector<128x128xf32> to vector<32x128xf32>
    %55 = arith.truncf %54 : vector<32x128xf32> to vector<32x128xbf16>
    %56 = vector.extract_strided_slice %49 {offsets = [96, 0], sizes = [32, 128], strides = [1, 1]} : vector<128x128xf32> to vector<32x128xf32>
    %57 = arith.truncf %56 : vector<32x128xf32> to vector<32x128xbf16>
    %58 = tpu.concatenate %46, %51, %53, %55, %57 in 1 : vector<32x128xbf16>, vector<32x128xbf16>, vector<32x128xbf16>, vector<32x128xbf16>, vector<32x128xbf16> -> vector<32x640xbf16>
    %c0_23 = arith.constant 0 : index
    %c0_24 = arith.constant 0 : index
    %59 = vector.load %arg3[%c0_23, %c0_24] : memref<1536x128xbf16, #tpu.memory_space<vmem>>, vector<640x128xbf16>
    %cst_25 = arith.constant dense<0.000000e+00> : vector<32x128xf32>
    %60 = tpu.matmul %58, %59, %cst_25 {dimension_numbers = #tpu.dot_dimension_numbers<[1], [0], [0], [1], [0, 0, 1, 1], [], []>} : vector<32x640xbf16>, vector<640x128xbf16>, vector<32x128xf32> -> vector<32x128xf32>
    %61 = vector.broadcast %39 : vector<1x128xf32> to vector<32x128xf32>
    %62 = arith.addf %60, %61 : vector<32x128xf32>
    %cst_26 = arith.constant 0.000000e+00 : f32
    %63 = vector.broadcast %cst_26 : f32 to vector<32x128xf32>
    %64 = arith.maximumf %62, %63 : vector<32x128xf32>
    %65 = arith.truncf %64 : vector<32x128xf32> to vector<32x128xbf16>
    %cst_27 = arith.constant dense<0.000000e+00> : vector<128x128xf32>
    %66 = tpu.matmul %25, %65, %cst_27 {dimension_numbers = #tpu.dot_dimension_numbers<[1], [0], [0], [1], [0, 0, 1, 1], [], []>} : vector<128x32xbf16>, vector<32x128xbf16>, vector<128x128xf32> -> vector<128x128xf32>
    %67 = vector.broadcast %24 : vector<128x1xf32> to vector<128x128xf32>
    %68 = arith.mulf %66, %67 : vector<128x128xf32>
    %69 = vector.extract_strided_slice %68 {offsets = [0, 0], sizes = [32, 128], strides = [1, 1]} : vector<128x128xf32> to vector<32x128xf32>
    %70 = arith.truncf %69 : vector<32x128xf32> to vector<32x128xbf16>
    %71 = vector.extract_strided_slice %68 {offsets = [32, 0], sizes = [32, 128], strides = [1, 1]} : vector<128x128xf32> to vector<32x128xf32>
    %72 = arith.truncf %71 : vector<32x128xf32> to vector<32x128xbf16>
    %73 = vector.extract_strided_slice %68 {offsets = [64, 0], sizes = [32, 128], strides = [1, 1]} : vector<128x128xf32> to vector<32x128xf32>
    %74 = arith.truncf %73 : vector<32x128xf32> to vector<32x128xbf16>
    %75 = vector.extract_strided_slice %68 {offsets = [96, 0], sizes = [32, 128], strides = [1, 1]} : vector<128x128xf32> to vector<32x128xf32>
    %76 = arith.truncf %75 : vector<32x128xf32> to vector<32x128xbf16>
    %77 = tpu.concatenate %65, %70, %72, %74, %76 in 1 : vector<32x128xbf16>, vector<32x128xbf16>, vector<32x128xbf16>, vector<32x128xbf16>, vector<32x128xbf16> -> vector<32x640xbf16>
    %c640 = arith.constant 640 : index
    %c0_28 = arith.constant 0 : index
    %78 = vector.load %arg3[%c640, %c0_28] : memref<1536x128xbf16, #tpu.memory_space<vmem>>, vector<640x128xbf16>
    %cst_29 = arith.constant dense<0.000000e+00> : vector<32x128xf32>
    %79 = tpu.matmul %77, %78, %cst_29 {dimension_numbers = #tpu.dot_dimension_numbers<[1], [0], [0], [1], [0, 0, 1, 1], [], []>} : vector<32x640xbf16>, vector<640x128xbf16>, vector<32x128xf32> -> vector<32x128xf32>
    %80 = vector.broadcast %40 : vector<1x128xf32> to vector<32x128xf32>
    %81 = arith.addf %79, %80 : vector<32x128xf32>
    %82 = arith.truncf %81 : vector<32x128xf32> to vector<32x128xbf16>
    %cst_30 = arith.constant dense<0.000000e+00> : vector<8x128xf32>
    %83 = tpu.matmul %38, %82, %cst_30 {dimension_numbers = #tpu.dot_dimension_numbers<[1], [0], [0], [1], [0, 0, 1, 1], [], []>} : vector<8x32xbf16>, vector<32x128xbf16>, vector<8x128xf32> -> vector<8x128xf32>
    %84 = vector.broadcast %37 : vector<8x1xf32> to vector<8x128xf32>
    %85 = arith.mulf %83, %84 : vector<8x128xf32>
    %86 = vector.broadcast %41 : vector<1x128xf32> to vector<8x128xf32>
    %87 = arith.mulf %85, %86 : vector<8x128xf32>
    %88 = vector.broadcast %42 : vector<1x128xf32> to vector<8x128xf32>
    %89 = arith.addf %87, %88 : vector<8x128xf32>
    %90 = arith.truncf %89 : vector<8x128xf32> to vector<8x128xbf16>
    %c1280 = arith.constant 1280 : index
    %c0_31 = arith.constant 0 : index
    %91 = vector.load %arg3[%c1280, %c0_31] : memref<1536x128xbf16, #tpu.memory_space<vmem>>, vector<128x128xbf16>
    %cst_32 = arith.constant dense<0.000000e+00> : vector<8x128xf32>
    %92 = tpu.matmul %90, %91, %cst_32 {dimension_numbers = #tpu.dot_dimension_numbers<[1], [0], [0], [1], [0, 0, 1, 1], [], []>} : vector<8x128xbf16>, vector<128x128xbf16>, vector<8x128xf32> -> vector<8x128xf32>
    %93 = vector.broadcast %43 : vector<1x128xf32> to vector<8x128xf32>
    %94 = arith.addf %92, %93 : vector<8x128xf32>
    %cst_33 = arith.constant 0.000000e+00 : f32
    %95 = vector.broadcast %cst_33 : f32 to vector<8x128xf32>
    %96 = arith.maximumf %94, %95 : vector<8x128xf32>
    %97 = arith.truncf %96 : vector<8x128xf32> to vector<8x128xbf16>
    %c1408 = arith.constant 1408 : index
    %c0_34 = arith.constant 0 : index
    %98 = vector.load %arg3[%c1408, %c0_34] : memref<1536x128xbf16, #tpu.memory_space<vmem>>, vector<128x128xbf16>
    %cst_35 = arith.constant dense<0.000000e+00> : vector<8x128xf32>
    %99 = tpu.matmul %97, %98, %cst_35 {dimension_numbers = #tpu.dot_dimension_numbers<[1], [0], [0], [1], [0, 0, 1, 1], [], []>} : vector<8x128xbf16>, vector<128x128xbf16>, vector<8x128xf32> -> vector<8x128xf32>
    %100 = vector.broadcast %44 : vector<1x128xf32> to vector<8x128xf32>
    %101 = arith.addf %99, %100 : vector<8x128xf32>
    %cst_36 = arith.constant dense<0xFF800000> : vector<8xf32>
    %102 = vector.multi_reduction <maximumf>, %101, %cst_36 [1] : vector<8x128xf32> to vector<8xf32>
    %103 = vector.shape_cast %102 : vector<8xf32> to vector<8x1xf32>
    %104 = vector.broadcast %103 : vector<8x1xf32> to vector<8x128xf32>
    %105 = arith.subf %101, %104 : vector<8x128xf32>
    %106 = math.exp %105 : vector<8x128xf32>
    %cst_37 = arith.constant dense<0.000000e+00> : vector<8xf32>
    %107 = vector.multi_reduction <add>, %106, %cst_37 [1] : vector<8x128xf32> to vector<8xf32>
    %108 = vector.shape_cast %107 : vector<8xf32> to vector<8x1xf32>
    %109 = math.log %108 : vector<8x1xf32>
    %110 = arith.addf %109, %103 : vector<8x1xf32>
    %111 = vector.broadcast %110 : vector<8x1xf32> to vector<8x128xf32>
    %112 = arith.subf %101, %111 : vector<8x128xf32>
    %c0_38 = arith.constant 0 : index
    %c0_39 = arith.constant 0 : index
    %113 = vector.load %arg5[%c0_38, %c0_39] : memref<8x128xf32, #tpu.memory_space<vmem>>, vector<8x128xf32>
    tpu.vector_store %arg5[%c0_38, %c0_39], %112 {strides = array<i32>} : memref<8x128xf32, #tpu.memory_space<vmem>>, vector<8x128xf32>,
    return
  }
}

</mosaic_0001>

<llo_original>
// kernel: rgcn_forward.1
$region0: #{rgcn_forward.1}
  #allocation0 [shape = 'u32[]', space=smem, size = 0x4, offset = 0x4, fixed_abs, tag = 'smem constant byte address 0x4 - core index']
  #allocation1 [shape = 'u32[144,128]{1,0:T(1,128)}', space=vmem, size = 0x12000, scoped, tag = 'internal scratch']
  %s0 = inlined_call_operand.vmem [shape: f32[32,128], index: 0, kind: input, shape index: {}]
  %s1 = inlined_call_operand.vmem [shape: s32[3,128], index: 1, kind: input, shape index: {}]
  %s2 = inlined_call_operand.vmem [shape: s32[1,32], index: 2, kind: input, shape index: {}]
  %s3 = inlined_call_operand.hbm [shape: bf16[1536,128], index: 3, kind: input, shape index: {}]
  %s4 = inlined_call_operand.vmem [shape: f32[8,128], index: 4, kind: input, shape index: {}]
  %s5 = inlined_call_operand.vmem [shape: f32[8,128], index: 5, kind: output, shape index: {}]
  %s6 = sld [smem:[#allocation0]]
  $region34: #{rgcn_forward.1} parent=0
    _
  %s8 = ssub.s32 1, %s6
  %s9 = scalar_select 0, %s8, %s6
  $region1: #{rgcn_forward.1} parent=0
    #allocation2 [shape = 'u8[393216]{0}', space=vmem, size = 0x60000, scoped, tag = 'input window, operand 3, single buffered']
    #allocation3 [shape = 's32[1]{0}', space=sflag, size = 0x4, scoped, tag = 'scoped memory for rgcn_forward.1']
    %10 = vsyncpa [#allocation3], 0
    // Predicated region
    $region2: #{rgcn_forward.1} parent=1 // pred_check
      _
    $region3: #{rgcn_forward.1} parent=1 // pred_check_branch
      %12 = sbr.rel (0) target = $region5
    $region4: #{rgcn_forward.1} parent=1 // pred_region
      _
    $region5: #{rgcn_forward.1} parent=1 // pred_fallthru
      _
    // Predicated region
    $region6: #{rgcn_forward.1} parent=1 // pred_check
      _
    $region7: #{rgcn_forward.1} parent=1 // pred_check_branch
      %14 = sbr.rel (0) target = $region9
    $region8: #{rgcn_forward.1} parent=1 // pred_region
      _
    $region9: #{rgcn_forward.1} parent=1 // pred_fallthru
      _
    // Predicated region
    $region10: #{rgcn_forward.1} parent=1 // pred_check
      _
    $region11: #{rgcn_forward.1} parent=1 // pred_check_branch
      %16 = sbr.rel (0) target = $region13
    $region12: #{rgcn_forward.1} parent=1 // pred_region
      _
    $region13: #{rgcn_forward.1} parent=1 // pred_fallthru
      _
    // Predicated region
    $region14: #{rgcn_forward.1} parent=1 // pred_check
      _
    $region15: #{rgcn_forward.1} parent=1 // pred_check_branch
      %18 = sbr.rel (0) target = $region17
    $region16: #{rgcn_forward.1} parent=1 // pred_region
      %s20 = ssub.s32 12288, 12288
      %21 = vsyncadd [#allocation3], %s20
      %s22 = sshll.u32 [#allocation2], 4
      %s23 = int_to_ptr.vmem [resolvable:$true] %s22
      %28 = dma.hbm_to_vmem [thread:$0]  %s3, 12288, %s23, [#allocation3], 64, 64, 4
    $region17: #{rgcn_forward.1} parent=1 // pred_fallthru
      _
    // Predicated region
    $region18: #{rgcn_forward.1} parent=1 // pred_check
      _
    $region19: #{rgcn_forward.1} parent=1 // pred_check_branch
      %30 = sbr.rel (0) target = $region21
    $region20: #{rgcn_forward.1} parent=1 // pred_region
      _
    $region21: #{rgcn_forward.1} parent=1 // pred_fallthru
      _
    // Predicated region
    $region22: #{rgcn_forward.1} parent=1 // pred_check
      _
    $region23: #{rgcn_forward.1} parent=1 // pred_check_branch
      %32 = sbr.rel (0) target = $region25
    $region24: #{rgcn_forward.1} parent=1 // pred_region
      %33 = dma.done [#allocation3], 12288
    $region25: #{rgcn_forward.1} parent=1 // pred_fallthru
      _
    %v35 = vld [vmem:[%s1] sm:$0x1]
    %v36 = vld [vmem:[%s1 + $0x1] sm:$0x1]
    %v37 = vld [vmem:[%s1 + $0x2] sm:$0x1]
    %v38 = vmul.u32 %v37, 32
    %v39 = vadd.s32 %v38, %v36
    %v40 = vlaneseq
    %v41 = vshrl.u32 %v40, 7
    %v42 = vadd.s32 %v41, 8
    %v43 = vadd.s32 %v41, 16
    %v44 = vadd.s32 %v41, 24
    %v45 = vadd.s32 %v41, 32
    %v46 = vadd.s32 %v41, 40
    %v47 = vadd.s32 %v41, 48
    %v48 = vadd.s32 %v41, 56
    %v49 = vadd.s32 %v41, 64
    %v50 = vadd.s32 %v41, 72
    %v51 = vadd.s32 %v41, 80
    %v52 = vadd.s32 %v41, 88
    %v53 = vadd.s32 %v41, 96
    %v54 = vadd.s32 %v41, 104
    %v55 = vadd.s32 %v41, 112
    %v56 = vadd.s32 %v41, 120
    %v57 = vlaneseq
    %v58 = vshrl.u32 %v57, 7
    %v59 = vsub.s32 0, %v58
    %v60 = vrot.slane %v39, %v59
    %vm61 = vcmp.eq.s32.totalorder %v41, %v60
    %vm62 = vcmp.eq.s32.totalorder %v42, %v60
    %vm63 = vcmp.eq.s32.totalorder %v43, %v60
    %vm64 = vcmp.eq.s32.totalorder %v44, %v60
    %vm65 = vcmp.eq.s32.totalorder %v45, %v60
    %vm66 = vcmp.eq.s32.totalorder %v46, %v60
    %vm67 = vcmp.eq.s32.totalorder %v47, %v60
    %vm68 = vcmp.eq.s32.totalorder %v48, %v60
    %vm69 = vcmp.eq.s32.totalorder %v49, %v60
    %vm70 = vcmp.eq.s32.totalorder %v50, %v60
    %vm71 = vcmp.eq.s32.totalorder %v51, %v60
    %vm72 = vcmp.eq.s32.totalorder %v52, %v60
    %vm73 = vcmp.eq.s32.totalorder %v53, %v60
    %vm74 = vcmp.eq.s32.totalorder %v54, %v60
    %vm75 = vcmp.eq.s32.totalorder %v55, %v60
    %vm76 = vcmp.eq.s32.totalorder %v56, %v60
    %v77 = vsel %vm61, 1, 0
    %v78 = vsel %vm62, 1, 0
    %v79 = vsel %vm63, 1, 0
    %v80 = vsel %vm64, 1, 0
    %v81 = vsel %vm65, 1, 0
    %v82 = vsel %vm66, 1, 0
    %v83 = vsel %vm67, 1, 0
    %v84 = vsel %vm68, 1, 0
    %v85 = vsel %vm69, 1, 0
    %v86 = vsel %vm70, 1, 0
    %v87 = vsel %vm71, 1, 0
    %v88 = vsel %vm72, 1, 0
    %v89 = vsel %vm73, 1, 0
    %v90 = vsel %vm74, 1, 0
    %v91 = vsel %vm75, 1, 0
    %v92 = vsel %vm76, 1, 0
    %v93 = vcvt.s32.f32 %v77
    %v94 = vcvt.s32.f32 %v78
    %v95 = vcvt.s32.f32 %v79
    %v96 = vcvt.s32.f32 %v80
    %v97 = vcvt.s32.f32 %v81
    %v98 = vcvt.s32.f32 %v82
    %v99 = vcvt.s32.f32 %v83
    %v100 = vcvt.s32.f32 %v84
    %v101 = vcvt.s32.f32 %v85
    %v102 = vcvt.s32.f32 %v86
    %v103 = vcvt.s32.f32 %v87
    %v104 = vcvt.s32.f32 %v88
    %v105 = vcvt.s32.f32 %v89
    %v106 = vcvt.s32.f32 %v90
    %v107 = vcvt.s32.f32 %v91
    %v108 = vcvt.s32.f32 %v92
    %v109 = vpack.c.bf16 %v94, %v93
    %v110 = vpack.c.bf16 %v96, %v95
    %v111 = vpack.c.bf16 %v98, %v97
    %v112 = vpack.c.bf16 %v100, %v99
    %v113 = vpack.c.bf16 %v102, %v101
    %v114 = vpack.c.bf16 %v104, %v103
    %v115 = vpack.c.bf16 %v106, %v105
    %v116 = vpack.c.bf16 %v108, %v107
    %v117 = vlaneseq
    %v118 = vshrl.u32 %v117, 7
    %v119 = vsub.s32 0, %v118
    %v120 = vrot.slane %v35, %v119
    %vm121 = vcmp.eq.s32.totalorder %v41, %v120
    %vm122 = vcmp.eq.s32.totalorder %v42, %v120
    %vm123 = vcmp.eq.s32.totalorder %v43, %v120
    %vm124 = vcmp.eq.s32.totalorder %v44, %v120
    %v125 = vsel %vm121, 1, 0
    %v126 = vsel %vm122, 1, 0
    %v127 = vsel %vm123, 1, 0
    %v128 = vsel %vm124, 1, 0
    %v129 = vcvt.s32.f32 %v125
    %v130 = vcvt.s32.f32 %v126
    %v131 = vcvt.s32.f32 %v127
    %v132 = vcvt.s32.f32 %v128
    %v133 = vpack.c.bf16 %v130, %v129
    %v134 = vpack.c.bf16 %v132, %v131
    %135 = vmatprep.subr.bf16.mxu0 0
    %136 = vmatpush1.bf16.xpose.msra.mxu0 0
    %137 = vmatprep.subr.bf16.mxu0 0
    %138 = vmatpush1.bf16.xpose.msra.mxu0 0
    %139 = vmatprep.subr.bf16.mxu0 0
    %140 = vmatpush1.bf16.xpose.msra.mxu0 0
    %141 = vmatprep.subr.bf16.mxu0 0
    %142 = vmatpush1.bf16.xpose.msra.mxu0 0
    %143 = vmatprep.subr.bf16.mxu0 0
    %144 = vmatpush1.bf16.xpose.msra.mxu0 0
    %145 = vmatprep.subr.bf16.mxu0 0
    %146 = vmatpush1.bf16.xpose.msra.mxu0 0
    %147 = vmatprep.subr.bf16.mxu0 0
    %148 = vmatpush1.bf16.xpose.msra.mxu0 %v134
    %149 = vmatprep.subr.bf16.mxu0 0
    %150 = vmatpush1.bf16.xpose.msra.mxu0 %v133
    %151 = vmatprep.subr.bf16.mxu0 0
    %152 = vmatpush2.bf16.xpose.msra.mxu0 0
    %153 = vmatprep.subr.bf16.mxu0 0
    %154 = vmatpush2.bf16.xpose.msra.mxu0 0
    %155 = vmatprep.subr.bf16.mxu0 0
    %156 = vmatpush2.bf16.xpose.msra.mxu0 0
    %157 = vmatprep.subr.bf16.mxu0 0
    %158 = vmatpush2.bf16.xpose.msra.mxu0 0
    %159 = vmatprep.subr.bf16.mxu0 0
    %160 = vmatpush2.bf16.xpose.msra.mxu0 0
    %161 = vmatprep.subr.bf16.mxu0 0
    %162 = vmatpush2.bf16.xpose.msra.mxu0 0
    %163 = vmatprep.subr.bf16.mxu0 0
    %164 = vmatpush2.bf16.xpose.msra.mxu0 0
    %165 = vmatprep.subr.bf16.mxu0 0
    %166 = vmatpush2.bf16.xpose.msra.mxu0 0
    %167 = vmatprep.mubr.bf16.mxu0 0
    %168 = vmatmul.mubr.bf16.gmra.mxu0 %v109
    %v169 = vpop.f32.mrf.mxu0
    %v170 = vadd.f32 0.0, %v169
    %v171 = vpop.f32.mrf.mxu0
    %v172 = vpop.f32.mrf.mxu0
    %v173 = vadd.f32 0.0, %v172
    %v174 = vpop.f32.mrf.mxu0
    %175 = vmatprep.mubr.bf16.mxu0 0
    %176 = vmatmul.mubr.bf16.gmra.mxu0 %v110
    %v177 = vpop.f32.mrf.mxu0
    %v178 = vadd.f32 0.0, %v177
    %v179 = vpop.f32.mrf.mxu0
    %v180 = vpop.f32.mrf.mxu0
    %v181 = vadd.f32 0.0, %v180
    %v182 = vpop.f32.mrf.mxu0
    %183 = vmatprep.mubr.bf16.mxu0 0
    %184 = vmatmul.mubr.bf16.gmra.mxu0 %v111
    %v185 = vpop.f32.mrf.mxu0
    %v186 = vadd.f32 0.0, %v185
    %v187 = vpop.f32.mrf.mxu0
    %v188 = vpop.f32.mrf.mxu0
    %v189 = vadd.f32 0.0, %v188
    %v190 = vpop.f32.mrf.mxu0
    %191 = vmatprep.mubr.bf16.mxu0 0
    %192 = vmatmul.mubr.bf16.gmra.mxu0 %v112
    %v193 = vpop.f32.mrf.mxu0
    %v194 = vadd.f32 0.0, %v193
    %v195 = vpop.f32.mrf.mxu0
    %v196 = vpop.f32.mrf.mxu0
    %v197 = vadd.f32 0.0, %v196
    %v198 = vpop.f32.mrf.mxu0
    %199 = vmatprep.mubr.bf16.mxu0 0
    %200 = vmatmul.mubr.bf16.gmra.mxu0 %v113
    %v201 = vpop.f32.mrf.mxu0
    %v202 = vadd.f32 0.0, %v201
    %v203 = vpop.f32.mrf.mxu0
    %v204 = vpop.f32.mrf.mxu0
    %v205 = vadd.f32 0.0, %v204
    %v206 = vpop.f32.mrf.mxu0
    %207 = vmatprep.mubr.bf16.mxu0 0
    %208 = vmatmul.mubr.bf16.gmra.mxu0 %v114
    %v209 = vpop.f32.mrf.mxu0
    %v210 = vadd.f32 0.0, %v209
    %v211 = vpop.f32.mrf.mxu0
    %v212 = vpop.f32.mrf.mxu0
    %v213 = vadd.f32 0.0, %v212
    %v214 = vpop.f32.mrf.mxu0
    %215 = vmatprep.mubr.bf16.mxu0 0
    %216 = vmatmul.mubr.bf16.gmra.mxu0 %v115
    %v217 = vpop.f32.mrf.mxu0
    %v218 = vadd.f32 0.0, %v217
    %v219 = vpop.f32.mrf.mxu0
    %v220 = vpop.f32.mrf.mxu0
    %v221 = vadd.f32 0.0, %v220
    %v222 = vpop.f32.mrf.mxu0
    %223 = vmatprep.mubr.bf16.mxu0 0
    %224 = vmatmul.mubr.bf16.gmra.mxu0 %v116
    %v225 = vpop.f32.mrf.mxu0
    %v226 = vadd.f32 0.0, %v225
    %v227 = vpop.f32.mrf.mxu0
    %v228 = vpop.f32.mrf.mxu0
    %v229 = vadd.f32 0.0, %v228
    %v230 = vpop.f32.mrf.mxu0
    %231 = vdwg.mxu0
    %vm232 = vcmask 261120
    %v233 = vsel %vm232, %v170, 0.0
    %234 = vadd.xlane.f32.xlu0 %v233
    %v235 = vpop.xlane.xlu0 %234
    %v236 = vsel %vm232, %v173, 0.0
    %237 = vadd.xlane.f32.xlu0 %v236
    %v238 = vpop.xlane.xlu0 %237
    %v239 = vsel %vm232, %v178, 0.0
    %240 = vadd.xlane.f32.xlu0 %v239
    %v241 = vpop.xlane.xlu0 %240
    %v242 = vsel %vm232, %v181, 0.0
    %243 = vadd.xlane.f32.xlu0 %v242
    %v244 = vpop.xlane.xlu0 %243
    %v245 = vsel %vm232, %v186, 0.0
    %246 = vadd.xlane.f32.xlu0 %v245
    %v247 = vpop.xlane.xlu0 %246
    %v248 = vsel %vm232, %v189, 0.0
    %249 = vadd.xlane.f32.xlu0 %v248
    %v250 = vpop.xlane.xlu0 %249
    %v251 = vsel %vm232, %v194, 0.0
    %252 = vadd.xlane.f32.xlu0 %v251
    %v253 = vpop.xlane.xlu0 %252
    %v254 = vsel %vm232, %v197, 0.0
    %255 = vadd.xlane.f32.xlu0 %v254
    %v256 = vpop.xlane.xlu0 %255
    %v257 = vsel %vm232, %v202, 0.0
    %258 = vadd.xlane.f32.xlu0 %v257
    %v259 = vpop.xlane.xlu0 %258
    %v260 = vsel %vm232, %v205, 0.0
    %261 = vadd.xlane.f32.xlu0 %v260
    %v262 = vpop.xlane.xlu0 %261
    %v263 = vsel %vm232, %v210, 0.0
    %264 = vadd.xlane.f32.xlu0 %v263
    %v265 = vpop.xlane.xlu0 %264
    %v266 = vsel %vm232, %v213, 0.0
    %267 = vadd.xlane.f32.xlu0 %v266
    %v268 = vpop.xlane.xlu0 %267
    %v269 = vsel %vm232, %v218, 0.0
    %270 = vadd.xlane.f32.xlu0 %v269
    %v271 = vpop.xlane.xlu0 %270
    %v272 = vsel %vm232, %v221, 0.0
    %273 = vadd.xlane.f32.xlu0 %v272
    %v274 = vpop.xlane.xlu0 %273
    %v275 = vsel %vm232, %v226, 0.0
    %276 = vadd.xlane.f32.xlu0 %v275
    %v277 = vpop.xlane.xlu0 %276
    %v278 = vsel %vm232, %v229, 0.0
    %279 = vadd.xlane.f32.xlu0 %v278
    %v280 = vpop.xlane.xlu0 %279
    %v281 = vmax.f32 %v235, 1.0
    %v282 = vmax.f32 %v238, 1.0
    %v283 = vmax.f32 %v241, 1.0
    %v284 = vmax.f32 %v244, 1.0
    %v285 = vmax.f32 %v247, 1.0
    %v286 = vmax.f32 %v250, 1.0
    %v287 = vmax.f32 %v253, 1.0
    %v288 = vmax.f32 %v256, 1.0
    %v289 = vmax.f32 %v259, 1.0
    %v290 = vmax.f32 %v262, 1.0
    %v291 = vmax.f32 %v265, 1.0
    %v292 = vmax.f32 %v268, 1.0
    %v293 = vmax.f32 %v271, 1.0
    %v294 = vmax.f32 %v274, 1.0
    %v295 = vmax.f32 %v277, 1.0
    %v296 = vmax.f32 %v280, 1.0
    %v297 = vrcp.pop %v281
    %v298 = vmul.f32 1.0, %v297
    %v299 = vrcp.pop %v282
    %v300 = vmul.f32 1.0, %v299
    %v301 = vrcp.pop %v283
    %v302 = vmul.f32 1.0, %v301
    %v303 = vrcp.pop %v284
    %v304 = vmul.f32 1.0, %v303
    %v305 = vrcp.pop %v285
    %v306 = vmul.f32 1.0, %v305
    %v307 = vrcp.pop %v286
    %v308 = vmul.f32 1.0, %v307
    %v309 = vrcp.pop %v287
    %v310 = vmul.f32 1.0, %v309
    %v311 = vrcp.pop %v288
    %v312 = vmul.f32 1.0, %v311
    %v313 = vrcp.pop %v289
    %v314 = vmul.f32 1.0, %v313
    %v315 = vrcp.pop %v290
    %v316 = vmul.f32 1.0, %v315
    %v317 = vrcp.pop %v291
    %v318 = vmul.f32 1.0, %v317
    %v319 = vrcp.pop %v292
    %v320 = vmul.f32 1.0, %v319
    %v321 = vrcp.pop %v293
    %v322 = vmul.f32 1.0, %v321
    %v323 = vrcp.pop %v294
    %v324 = vmul.f32 1.0, %v323
    %v325 = vrcp.pop %v295
    %v326 = vmul.f32 1.0, %v325
    %v327 = vrcp.pop %v296
    %v328 = vmul.f32 1.0, %v327
    %v329 = vpack.c.bf16 %v173, %v170
    %v330 = vpack.c.bf16 %v181, %v178
    %v331 = vpack.c.bf16 %v189, %v186
    %v332 = vpack.c.bf16 %v197, %v194
    %v333 = vpack.c.bf16 %v205, %v202
    %v334 = vpack.c.bf16 %v213, %v210
    %v335 = vpack.c.bf16 %v221, %v218
    %v336 = vpack.c.bf16 %v229, %v226
    %v337 = vld [vmem:[%s2] sm:$0x1]
    %v338 = vlaneseq
    %v339 = vshrl.u32 %v338, 7
    %v340 = vsub.s32 0, %v339
    %v341 = vrot.slane %v337, %v340
    %vm342 = vcmp.eq.s32.totalorder %v41, %v341
    %v343 = vsel %vm342, 1, 0
    %v344 = vcvt.s32.f32 %v343
    %v345 = vsel %vm232, %v344, 0.0
    %346 = vadd.xlane.f32.xlu0 %v345
    %v347 = vpop.xlane.xlu0 %346
    %v348 = vmax.f32 %v347, 1.0
    %v349 = vrcp.pop %v348
    %v350 = vmul.f32 1.0, %v349
    %v351 = vpack.c.bf16 %v344, %v344
    %v352 = vld [vmem:[%s4] sm:$0x1]
    %v353 = vld [vmem:[%s4 + $0x1] sm:$0x1]
    %v354 = vld [vmem:[%s4 + $0x2] sm:$0x1]
    %v355 = vld [vmem:[%s4 + $0x3] sm:$0x1]
    %v356 = vld [vmem:[%s4 + $0x4] sm:$0x1]
    %v357 = vld [vmem:[%s4 + $0x5] sm:$0x1]
    %v358 = vld [vmem:[%s0] sm:$0xff]
    %v359 = vld [vmem:[%s0 + $0x8] sm:$0xff]
    %v360 = vld [vmem:[%s0 + $0x10] sm:$0xff]
    %v361 = vld [vmem:[%s0 + $0x18] sm:$0xff]
    %v362 = vpack.c.bf16 %v359, %v358
    %v363 = vpack.c.bf16 %v361, %v360
    %v365 = vsel %vm232, %v329, 0
    %v368 = vsel %vm232, %v330, 0
    %v371 = vsel %vm232, %v331, 0
    %v374 = vsel %vm232, %v332, 0
    %v377 = vsel %vm232, %v333, 0
    %v380 = vsel %vm232, %v334, 0
    %v383 = vsel %vm232, %v335, 0
    %v386 = vsel %vm232, %v336, 0
    %388 = vmatprep.subr.bf16.mxu0 0
    %389 = vmatpush1.bf16.msra.mxu0 0
    %390 = vmatprep.subr.bf16.mxu0 0
    %391 = vmatpush1.bf16.msra.mxu0 0
    %392 = vmatprep.subr.bf16.mxu0 0
    %393 = vmatpush1.bf16.msra.mxu0 0
    %394 = vmatprep.subr.bf16.mxu0 0
    %395 = vmatpush1.bf16.msra.mxu0 0
    %396 = vmatprep.subr.bf16.mxu0 0
    %397 = vmatpush1.bf16.msra.mxu0 0
    %398 = vmatprep.subr.bf16.mxu0 0
    %399 = vmatpush1.bf16.msra.mxu0 0
    %400 = vmatprep.subr.bf16.mxu0 0
    %401 = vmatpush1.bf16.msra.mxu0 %v363
    %402 = vmatprep.subr.bf16.mxu0 0
    %403 = vmatpush1.bf16.msra.mxu0 %v362
    %404 = vmatprep.subr.bf16.mxu0 0
    %405 = vmatpush2.bf16.msra.mxu0 0
    %406 = vmatprep.subr.bf16.mxu0 0
    %407 = vmatpush2.bf16.msra.mxu0 0
    %408 = vmatprep.subr.bf16.mxu0 0
    %409 = vmatpush2.bf16.msra.mxu0 0
    %410 = vmatprep.subr.bf16.mxu0 0
    %411 = vmatpush2.bf16.msra.mxu0 0
    %412 = vmatprep.subr.bf16.mxu0 0
    %413 = vmatpush2.bf16.msra.mxu0 0
    %414 = vmatprep.subr.bf16.mxu0 0
    %415 = vmatpush2.bf16.msra.mxu0 0
    %416 = vmatprep.subr.bf16.mxu0 0
    %417 = vmatpush2.bf16.msra.mxu0 0
    %418 = vmatprep.subr.bf16.mxu0 0
    %419 = vmatpush2.bf16.msra.mxu0 0
    %420 = vmatprep.mubr.bf16.mxu0 0
    %421 = vmatmul.mubr.bf16.gmra.mxu0 %v365
    %v422 = vpop.f32.mrf.mxu0
    %v423 = vadd.f32 0.0, %v422
    %v424 = vpop.f32.mrf.mxu0
    %v425 = vpop.f32.mrf.mxu0
    %v426 = vadd.f32 0.0, %v425
    %v427 = vpop.f32.mrf.mxu0
    %428 = vmatprep.mubr.bf16.mxu0 0
    %429 = vmatmul.mubr.bf16.gmra.mxu0 %v368
    %v430 = vpop.f32.mrf.mxu0
    %v431 = vadd.f32 0.0, %v430
    %v432 = vpop.f32.mrf.mxu0
    %v433 = vpop.f32.mrf.mxu0
    %v434 = vadd.f32 0.0, %v433
    %v435 = vpop.f32.mrf.mxu0
    %436 = vmatprep.mubr.bf16.mxu0 0
    %437 = vmatmul.mubr.bf16.gmra.mxu0 %v371
    %v438 = vpop.f32.mrf.mxu0
    %v439 = vadd.f32 0.0, %v438
    %v440 = vpop.f32.mrf.mxu0
    %v441 = vpop.f32.mrf.mxu0
    %v442 = vadd.f32 0.0, %v441
    %v443 = vpop.f32.mrf.mxu0
    %444 = vmatprep.mubr.bf16.mxu0 0
    %445 = vmatmul.mubr.bf16.gmra.mxu0 %v374
    %v446 = vpop.f32.mrf.mxu0
    %v447 = vadd.f32 0.0, %v446
    %v448 = vpop.f32.mrf.mxu0
    %v449 = vpop.f32.mrf.mxu0
    %v450 = vadd.f32 0.0, %v449
    %v451 = vpop.f32.mrf.mxu0
    %452 = vmatprep.mubr.bf16.mxu0 0
    %453 = vmatmul.mubr.bf16.gmra.mxu0 %v377
    %v454 = vpop.f32.mrf.mxu0
    %v455 = vadd.f32 0.0, %v454
    %v456 = vpop.f32.mrf.mxu0
    %v457 = vpop.f32.mrf.mxu0
    %v458 = vadd.f32 0.0, %v457
    %v459 = vpop.f32.mrf.mxu0
    %460 = vmatprep.mubr.bf16.mxu0 0
    %461 = vmatmul.mubr.bf16.gmra.mxu0 %v380
    %v462 = vpop.f32.mrf.mxu0
    %v463 = vadd.f32 0.0, %v462
    %v464 = vpop.f32.mrf.mxu0
    %v465 = vpop.f32.mrf.mxu0
    %v466 = vadd.f32 0.0, %v465
    %v467 = vpop.f32.mrf.mxu0
    %468 = vmatprep.mubr.bf16.mxu0 0
    %469 = vmatmul.mubr.bf16.gmra.mxu0 %v383
    %v470 = vpop.f32.mrf.mxu0
    %v471 = vadd.f32 0.0, %v470
    %v472 = vpop.f32.mrf.mxu0
    %v473 = vpop.f32.mrf.mxu0
    %v474 = vadd.f32 0.0, %v473
    %v475 = vpop.f32.mrf.mxu0
    %476 = vmatprep.mubr.bf16.mxu0 0
    %477 = vmatmul.mubr.bf16.gmra.mxu0 %v386
    %v478 = vpop.f32.mrf.mxu0
    %v479 = vadd.f32 0.0, %v478
    %v480 = vpop.f32.mrf.mxu0
    %v481 = vpop.f32.mrf.mxu0
    %v482 = vadd.f32 0.0, %v481
    %v483 = vpop.f32.mrf.mxu0
    %484 = vdwg.mxu0
    %v485 = vmul.f32 %v423, %v298
    %v486 = vmul.f32 %v426, %v300
    %v487 = vmul.f32 %v431, %v302
    %v488 = vmul.f32 %v434, %v304
    %v489 = vmul.f32 %v439, %v306
    %v490 = vmul.f32 %v442, %v308
    %v491 = vmul.f32 %v447, %v310
    %v492 = vmul.f32 %v450, %v312
    %v493 = vmul.f32 %v455, %v314
    %v494 = vmul.f32 %v458, %v316
    %v495 = vmul.f32 %v463, %v318
    %v496 = vmul.f32 %v466, %v320
    %v497 = vmul.f32 %v471, %v322
    %v498 = vmul.f32 %v474, %v324
    %v499 = vmul.f32 %v479, %v326
    %v500 = vmul.f32 %v482, %v328
    %v501 = vpack.c.bf16 %v486, %v485
    %v502 = vpack.c.bf16 %v488, %v487
    %v503 = vpack.c.bf16 %v490, %v489
    %v504 = vpack.c.bf16 %v492, %v491
    %v505 = vpack.c.bf16 %v494, %v493
    %v506 = vpack.c.bf16 %v496, %v495
    %v507 = vpack.c.bf16 %v498, %v497
    %v508 = vpack.c.bf16 %v500, %v499
    %v509 = vld [vmem:[#allocation2] sm:$0xf]
    %v510 = vld [vmem:[#allocation2 + $0x4] sm:$0xf]
    %v511 = vld [vmem:[#allocation2 + $0x8] sm:$0xf]
    %v512 = vld [vmem:[#allocation2 + $0xc] sm:$0xf]
    %v513 = vld [vmem:[#allocation2 + $0x10] sm:$0xf]
    %v514 = vld [vmem:[#allocation2 + $0x14] sm:$0xf]
    %v515 = vld [vmem:[#allocation2 + $0x18] sm:$0xf]
    %v516 = vld [vmem:[#allocation2 + $0x1c] sm:$0xf]
    %v517 = vld [vmem:[#allocation2 + $0x20] sm:$0xf]
    %v518 = vld [vmem:[#allocation2 + $0x24] sm:$0xf]
    %v519 = vld [vmem:[#allocation2 + $0x28] sm:$0xf]
    %v520 = vld [vmem:[#allocation2 + $0x2c] sm:$0xf]
    %v521 = vld [vmem:[#allocation2 + $0x30] sm:$0xf]
    %v522 = vld [vmem:[#allocation2 + $0x34] sm:$0xf]
    %v523 = vld [vmem:[#allocation2 + $0x38] sm:$0xf]
    %v524 = vld [vmem:[#allocation2 + $0x3c] sm:$0xf]
    %v525 = vld [vmem:[#allocation2 + $0x40] sm:$0xf]
    %v526 = vld [vmem:[#allocation2 + $0x44] sm:$0xf]
    %v527 = vld [vmem:[#allocation2 + $0x48] sm:$0xf]
    %v528 = vld [vmem:[#allocation2 + $0x4c] sm:$0xf]
    %v529 = vld [vmem:[#allocation2 + $0x50] sm:$0xf]
    %v530 = vld [vmem:[#allocation2 + $0x54] sm:$0xf]
    %v531 = vld [vmem:[#allocation2 + $0x58] sm:$0xf]
    %v532 = vld [vmem:[#allocation2 + $0x5c] sm:$0xf]
    %v533 = vld [vmem:[#allocation2 + $0x60] sm:$0xf]
    %v534 = vld [vmem:[#allocation2 + $0x64] sm:$0xf]
    %v535 = vld [vmem:[#allocation2 + $0x68] sm:$0xf]
    %v536 = vld [vmem:[#allocation2 + $0x6c] sm:$0xf]
    %v537 = vld [vmem:[#allocation2 + $0x70] sm:$0xf]
    %v538 = vld [vmem:[#allocation2 + $0x74] sm:$0xf]
    %v539 = vld [vmem:[#allocation2 + $0x78] sm:$0xf]
    %v540 = vld [vmem:[#allocation2 + $0x7c] sm:$0xf]
    %v541 = vld [vmem:[#allocation2 + $0x80] sm:$0xf]
    %v542 = vld [vmem:[#allocation2 + $0x84] sm:$0xf]
    %v543 = vld [vmem:[#allocation2 + $0x88] sm:$0xf]
    %v544 = vld [vmem:[#allocation2 + $0x8c] sm:$0xf]
    %v545 = vld [vmem:[#allocation2 + $0x90] sm:$0xf]
    %v546 = vld [vmem:[#allocation2 + $0x94] sm:$0xf]
    %v547 = vld [vmem:[#allocation2 + $0x98] sm:$0xf]
    %v548 = vld [vmem:[#allocation2 + $0x9c] sm:$0xf]
    %v549 = vld [vmem:[#allocation2 + $0xa0] sm:$0xf]
    %v550 = vld [vmem:[#allocation2 + $0xa4] sm:$0xf]
    %v551 = vld [vmem:[#allocation2 + $0xa8] sm:$0xf]
    %v552 = vld [vmem:[#allocation2 + $0xac] sm:$0xf]
    %v553 = vld [vmem:[#allocation2 + $0xb0] sm:$0xf]
    %v554 = vld [vmem:[#allocation2 + $0xb4] sm:$0xf]
    %v555 = vld [vmem:[#allocation2 + $0xb8] sm:$0xf]
    %v556 = vld [vmem:[#allocation2 + $0xbc] sm:$0xf]
    %v557 = vld [vmem:[#allocation2 + $0xc0] sm:$0xf]
    %v558 = vld [vmem:[#allocation2 + $0xc4] sm:$0xf]
    %v559 = vld [vmem:[#allocation2 + $0xc8] sm:$0xf]
    %v560 = vld [vmem:[#allocation2 + $0xcc] sm:$0xf]
    %v561 = vld [vmem:[#allocation2 + $0xd0] sm:$0xf]
    %v562 = vld [vmem:[#allocation2 + $0xd4] sm:$0xf]
    %v563 = vld [vmem:[#allocation2 + $0xd8] sm:$0xf]
    %v564 = vld [vmem:[#allocation2 + $0xdc] sm:$0xf]
    %v565 = vld [vmem:[#allocation2 + $0xe0] sm:$0xf]
    %v566 = vld [vmem:[#allocation2 + $0xe4] sm:$0xf]
    %v567 = vld [vmem:[#allocation2 + $0xe8] sm:$0xf]
    %v568 = vld [vmem:[#allocation2 + $0xec] sm:$0xf]
    %v569 = vld [vmem:[#allocation2 + $0xf0] sm:$0xf]
    %v570 = vld [vmem:[#allocation2 + $0xf4] sm:$0xf]
    %v571 = vld [vmem:[#allocation2 + $0xf8] sm:$0xf]
    %v572 = vld [vmem:[#allocation2 + $0xfc] sm:$0xf]
    %v573 = vld [vmem:[#allocation2 + $0x100] sm:$0xf]
    %v574 = vld [vmem:[#allocation2 + $0x104] sm:$0xf]
    %v575 = vld [vmem:[#allocation2 + $0x108] sm:$0xf]
    %v576 = vld [vmem:[#allocation2 + $0x10c] sm:$0xf]
    %v577 = vld [vmem:[#allocation2 + $0x110] sm:$0xf]
    %v578 = vld [vmem:[#allocation2 + $0x114] sm:$0xf]
    %v579 = vld [vmem:[#allocation2 + $0x118] sm:$0xf]
    %v580 = vld [vmem:[#allocation2 + $0x11c] sm:$0xf]
    %v581 = vld [vmem:[#allocation2 + $0x120] sm:$0xf]
    %v582 = vld [vmem:[#allocation2 + $0x124] sm:$0xf]
    %v583 = vld [vmem:[#allocation2 + $0x128] sm:$0xf]
    %v584 = vld [vmem:[#allocation2 + $0x12c] sm:$0xf]
    %v585 = vld [vmem:[#allocation2 + $0x130] sm:$0xf]
    %v586 = vld [vmem:[#allocation2 + $0x134] sm:$0xf]
    %v587 = vld [vmem:[#allocation2 + $0x138] sm:$0xf]
    %v588 = vld [vmem:[#allocation2 + $0x13c] sm:$0xf]
    %v589 = vlaneseq
    %v590 = vshrl.u32 %v589, 7
    %v591 = vsub.s32 0, %v590
    %v592 = vrot.slane %v352, %v591
    %v673 = vunpack.c.l.b16 %v509
    %v674 = vunpack.c.l.b16 %v510
    %v675 = vunpack.c.l.b16 %v511
    %v676 = vunpack.c.l.b16 %v512
    %v677 = vunpack.c.l.b16 %v513
    %v678 = vunpack.c.l.b16 %v514
    %v679 = vunpack.c.l.b16 %v515
    %v680 = vunpack.c.l.b16 %v516
    %v681 = vunpack.c.l.b16 %v517
    %v682 = vunpack.c.l.b16 %v518
    %v683 = vunpack.c.l.b16 %v519
    %v684 = vunpack.c.l.b16 %v520
    %v685 = vunpack.c.l.b16 %v521
    %v686 = vunpack.c.l.b16 %v522
    %v687 = vunpack.c.l.b16 %v523
    %v688 = vunpack.c.l.b16 %v524
    %v689 = vunpack.c.l.b16 %v525
    %v690 = vunpack.c.l.b16 %v526
    %v691 = vunpack.c.l.b16 %v527
    %v692 = vunpack.c.l.b16 %v528
    %v693 = vunpack.c.l.b16 %v529
    %v694 = vunpack.c.l.b16 %v530
    %v695 = vunpack.c.l.b16 %v531
    %v696 = vunpack.c.l.b16 %v532
    %v697 = vunpack.c.l.b16 %v533
    %v698 = vunpack.c.l.b16 %v534
    %v699 = vunpack.c.l.b16 %v535
    %v700 = vunpack.c.l.b16 %v536
    %v701 = vunpack.c.l.b16 %v537
    %v702 = vunpack.c.l.b16 %v538
    %v703 = vunpack.c.l.b16 %v539
    %v704 = vunpack.c.l.b16 %v540
    %v705 = vunpack.c.l.b16 %v541
    %v706 = vunpack.c.l.b16 %v542
    %v707 = vunpack.c.l.b16 %v543
    %v708 = vunpack.c.l.b16 %v544
    %v709 = vunpack.c.l.b16 %v545
    %v710 = vunpack.c.l.b16 %v546
    %v711 = vunpack.c.l.b16 %v547
    %v712 = vunpack.c.l.b16 %v548
    %v713 = vunpack.c.l.b16 %v549
    %v714 = vunpack.c.l.b16 %v550
    %v715 = vunpack.c.l.b16 %v551
    %v716 = vunpack.c.l.b16 %v552
    %v717 = vunpack.c.l.b16 %v553
    %v718 = vunpack.c.l.b16 %v554
    %v719 = vunpack.c.l.b16 %v555
    %v720 = vunpack.c.l.b16 %v556
    %v721 = vunpack.c.l.b16 %v557
    %v722 = vunpack.c.l.b16 %v558
    %v723 = vunpack.c.l.b16 %v559
    %v724 = vunpack.c.l.b16 %v560
    %v725 = vunpack.c.l.b16 %v561
    %v726 = vunpack.c.l.b16 %v562
    %v727 = vunpack.c.l.b16 %v563
    %v728 = vunpack.c.l.b16 %v564
    %v729 = vunpack.c.l.b16 %v565
    %v730 = vunpack.c.l.b16 %v566
    %v731 = vunpack.c.l.b16 %v567
    %v732 = vunpack.c.l.b16 %v568
    %v733 = vunpack.c.l.b16 %v569
    %v734 = vunpack.c.l.b16 %v570
    %v735 = vunpack.c.l.b16 %v571
    %v736 = vunpack.c.l.b16 %v572
    %v737 = vunpack.c.l.b16 %v573
    %v738 = vunpack.c.l.b16 %v574
    %v739 = vunpack.c.l.b16 %v575
    %v740 = vunpack.c.l.b16 %v576
    %v741 = vunpack.c.l.b16 %v577
    %v742 = vunpack.c.l.b16 %v578
    %v743 = vunpack.c.l.b16 %v579
    %v744 = vunpack.c.l.b16 %v580
    %v745 = vunpack.c.l.b16 %v581
    %v746 = vunpack.c.l.b16 %v582
    %v747 = vunpack.c.l.b16 %v583
    %v748 = vunpack.c.l.b16 %v584
    %v749 = vunpack.c.l.b16 %v585
    %v750 = vunpack.c.l.b16 %v586
    %v751 = vunpack.c.l.b16 %v587
    %v752 = vunpack.c.l.b16 %v588
    %v753 = vpack.c.b16 %v674, %v673
    %v754 = vpack.c.b16 %v676, %v675
    %v755 = vpack.c.b16 %v678, %v677
    %v756 = vpack.c.b16 %v680, %v679
    %v757 = vpack.c.b16 %v682, %v681
    %v758 = vpack.c.b16 %v684, %v683
    %v759 = vpack.c.b16 %v686, %v685
    %v760 = vpack.c.b16 %v688, %v687
    %v761 = vpack.c.b16 %v690, %v689
    %v762 = vpack.c.b16 %v692, %v691
    %v763 = vpack.c.b16 %v694, %v693
    %v764 = vpack.c.b16 %v696, %v695
    %v765 = vpack.c.b16 %v698, %v697
    %v766 = vpack.c.b16 %v700, %v699
    %v767 = vpack.c.b16 %v702, %v701
    %v768 = vpack.c.b16 %v704, %v703
    %v769 = vpack.c.b16 %v706, %v705
    %v770 = vpack.c.b16 %v708, %v707
    %v771 = vpack.c.b16 %v710, %v709
    %v772 = vpack.c.b16 %v712, %v711
    %v773 = vpack.c.b16 %v714, %v713
    %v774 = vpack.c.b16 %v716, %v715
    %v775 = vpack.c.b16 %v718, %v717
    %v776 = vpack.c.b16 %v720, %v719
    %v777 = vpack.c.b16 %v722, %v721
    %v778 = vpack.c.b16 %v724, %v723
    %v779 = vpack.c.b16 %v726, %v725
    %v780 = vpack.c.b16 %v728, %v727
    %v781 = vpack.c.b16 %v730, %v729
    %v782 = vpack.c.b16 %v732, %v731
    %v783 = vpack.c.b16 %v734, %v733
    %v784 = vpack.c.b16 %v736, %v735
    %v785 = vpack.c.b16 %v738, %v737
    %v786 = vpack.c.b16 %v740, %v739
    %v787 = vpack.c.b16 %v742, %v741
    %v788 = vpack.c.b16 %v744, %v743
    %v789 = vpack.c.b16 %v746, %v745
    %v790 = vpack.c.b16 %v748, %v747
    %v791 = vpack.c.b16 %v750, %v749
    %v792 = vpack.c.b16 %v752, %v751
    %833 = vmatprep.subr.bf16.mxu0 0
    %834 = vmatpush1.bf16.msra.mxu0 %v760
    %835 = vmatprep.subr.bf16.mxu0 0
    %836 = vmatpush1.bf16.msra.mxu0 %v759
    %837 = vmatprep.subr.bf16.mxu0 0
    %838 = vmatpush1.bf16.msra.mxu0 %v758
    %839 = vmatprep.subr.bf16.mxu0 0
    %840 = vmatpush1.bf16.msra.mxu0 %v757
    %841 = vmatprep.subr.bf16.mxu0 0
    %842 = vmatpush1.bf16.msra.mxu0 %v756
    %843 = vmatprep.subr.bf16.mxu0 0
    %844 = vmatpush1.bf16.msra.mxu0 %v755
    %845 = vmatprep.subr.bf16.mxu0 0
    %846 = vmatpush1.bf16.msra.mxu0 %v754
    %847 = vmatprep.subr.bf16.mxu0 0
    %848 = vmatpush1.bf16.msra.mxu0 %v753
    %849 = vmatprep.subr.bf16.mxu0 0
    %850 = vmatpush2.bf16.msra.mxu0 %v768
    %851 = vmatprep.subr.bf16.mxu0 0
    %852 = vmatpush2.bf16.msra.mxu0 %v767
    %853 = vmatprep.subr.bf16.mxu0 0
    %854 = vmatpush2.bf16.msra.mxu0 %v766
    %855 = vmatprep.subr.bf16.mxu0 0
    %856 = vmatpush2.bf16.msra.mxu0 %v765
    %857 = vmatprep.subr.bf16.mxu0 0
    %858 = vmatpush2.bf16.msra.mxu0 %v764
    %859 = vmatprep.subr.bf16.mxu0 0
    %860 = vmatpush2.bf16.msra.mxu0 %v763
    %861 = vmatprep.subr.bf16.mxu0 0
    %862 = vmatpush2.bf16.msra.mxu0 %v762
    %863 = vmatprep.subr.bf16.mxu0 0
    %864 = vmatpush2.bf16.msra.mxu0 %v761
    %865 = vmatprep.mubr.bf16.mxu0 %v501
    %866 = vmatmul.mubr.bf16.gmra.mxu0 %v362
    %v867 = vpop.f32.mrf.mxu0
    %v868 = vadd.f32 %v592, %v867
    %v869 = vpop.f32.mrf.mxu0
    %v870 = vpop.f32.mrf.mxu0
    %v871 = vadd.f32 %v592, %v870
    %v872 = vpop.f32.mrf.mxu0
    %873 = vmatprep.mubr.bf16.mxu0 %v502
    %874 = vmatmul.mubr.bf16.gmra.mxu0 %v363
    %v875 = vpop.f32.mrf.mxu0
    %v876 = vadd.f32 %v592, %v875
    %v877 = vpop.f32.mrf.mxu0
    %v878 = vpop.f32.mrf.mxu0
    %v879 = vadd.f32 %v592, %v878
    %v880 = vpop.f32.mrf.mxu0
    %881 = vdwg.mxu0
    %882 = vmatprep.subr.bf16.mxu0 0
    %883 = vmatpush1.bf16.msra.mxu0 %v776
    %884 = vmatprep.subr.bf16.mxu0 0
    %885 = vmatpush1.bf16.msra.mxu0 %v775
    %886 = vmatprep.subr.bf16.mxu0 0
    %887 = vmatpush1.bf16.msra.mxu0 %v774
    %888 = vmatprep.subr.bf16.mxu0 0
    %889 = vmatpush1.bf16.msra.mxu0 %v773
    %890 = vmatprep.subr.bf16.mxu0 0
    %891 = vmatpush1.bf16.msra.mxu0 %v772
    %892 = vmatprep.subr.bf16.mxu0 0
    %893 = vmatpush1.bf16.msra.mxu0 %v771
    %894 = vmatprep.subr.bf16.mxu0 0
    %895 = vmatpush1.bf16.msra.mxu0 %v770
    %896 = vmatprep.subr.bf16.mxu0 0
    %897 = vmatpush1.bf16.msra.mxu0 %v769
    %898 = vmatprep.subr.bf16.mxu0 0
    %899 = vmatpush2.bf16.msra.mxu0 %v784
    %900 = vmatprep.subr.bf16.mxu0 0
    %901 = vmatpush2.bf16.msra.mxu0 %v783
    %902 = vmatprep.subr.bf16.mxu0 0
    %903 = vmatpush2.bf16.msra.mxu0 %v782
    %904 = vmatprep.subr.bf16.mxu0 0
    %905 = vmatpush2.bf16.msra.mxu0 %v781
    %906 = vmatprep.subr.bf16.mxu0 0
    %907 = vmatpush2.bf16.msra.mxu0 %v780
    %908 = vmatprep.subr.bf16.mxu0 0
    %909 = vmatpush2.bf16.msra.mxu0 %v779
    %910 = vmatprep.subr.bf16.mxu0 0
    %911 = vmatpush2.bf16.msra.mxu0 %v778
    %912 = vmatprep.subr.bf16.mxu0 0
    %913 = vmatpush2.bf16.msra.mxu0 %v777
    %914 = vmatprep.mubr.bf16.mxu0 %v505
    %915 = vmatmul.mubr.bf16.gmra.mxu0 %v503
    %v916 = vpop.f32.mrf.mxu0
    %v917 = vadd.f32 %v868, %v916
    %v918 = vpop.f32.mrf.mxu0
    %v919 = vpop.f32.mrf.mxu0
    %v920 = vadd.f32 %v871, %v919
    %v921 = vpop.f32.mrf.mxu0
    %922 = vmatprep.mubr.bf16.mxu0 %v506
    %923 = vmatmul.mubr.bf16.gmra.mxu0 %v504
    %v924 = vpop.f32.mrf.mxu0
    %v925 = vadd.f32 %v876, %v924
    %v926 = vpop.f32.mrf.mxu0
    %v927 = vpop.f32.mrf.mxu0
    %v928 = vadd.f32 %v879, %v927
    %v929 = vpop.f32.mrf.mxu0
    %930 = vdwg.mxu0
    %931 = vmatprep.subr.bf16.mxu0 0
    %932 = vmatpush1.bf16.msra.mxu0 %v792
    %933 = vmatprep.subr.bf16.mxu0 0
    %934 = vmatpush1.bf16.msra.mxu0 %v791
    %935 = vmatprep.subr.bf16.mxu0 0
    %936 = vmatpush1.bf16.msra.mxu0 %v790
    %937 = vmatprep.subr.bf16.mxu0 0
    %938 = vmatpush1.bf16.msra.mxu0 %v789
    %939 = vmatprep.subr.bf16.mxu0 0
    %940 = vmatpush1.bf16.msra.mxu0 %v788
    %941 = vmatprep.subr.bf16.mxu0 0
    %942 = vmatpush1.bf16.msra.mxu0 %v787
    %943 = vmatprep.subr.bf16.mxu0 0
    %944 = vmatpush1.bf16.msra.mxu0 %v786
    %945 = vmatprep.subr.bf16.mxu0 0
    %946 = vmatpush1.bf16.msra.mxu0 %v785
    %947 = vmatprep.subr.bf16.mxu0 0
    %948 = vmatpush2.bf16.msra.mxu0 0
    %949 = vmatprep.subr.bf16.mxu0 0
    %950 = vmatpush2.bf16.msra.mxu0 0
    %951 = vmatprep.subr.bf16.mxu0 0
    %952 = vmatpush2.bf16.msra.mxu0 0
    %953 = vmatprep.subr.bf16.mxu0 0
    %954 = vmatpush2.bf16.msra.mxu0 0
    %955 = vmatprep.subr.bf16.mxu0 0
    %956 = vmatpush2.bf16.msra.mxu0 0
    %957 = vmatprep.subr.bf16.mxu0 0
    %958 = vmatpush2.bf16.msra.mxu0 0
    %959 = vmatprep.subr.bf16.mxu0 0
    %960 = vmatpush2.bf16.msra.mxu0 0
    %961 = vmatprep.subr.bf16.mxu0 0
    %962 = vmatpush2.bf16.msra.mxu0 0
    %963 = vmatprep.mubr.bf16.mxu0 0
    %964 = vmatmul.mubr.bf16.gmra.mxu0 %v507
    %v965 = vpop.f32.mrf.mxu0
    %v966 = vadd.f32 %v917, %v965
    %v967 = vpop.f32.mrf.mxu0
    %v968 = vpop.f32.mrf.mxu0
    %v969 = vadd.f32 %v920, %v968
    %v970 = vpop.f32.mrf.mxu0
    %971 = vmatprep.mubr.bf16.mxu0 0
    %972 = vmatmul.mubr.bf16.gmra.mxu0 %v508
    %v973 = vpop.f32.mrf.mxu0
    %v974 = vadd.f32 %v925, %v973
    %v975 = vpop.f32.mrf.mxu0
    %v976 = vpop.f32.mrf.mxu0
    %v977 = vadd.f32 %v928, %v976
    %v978 = vpop.f32.mrf.mxu0
    %979 = vdwg.mxu0
    %v980 = vmax.f32 %v966, 0.0
    %v981 = vmax.f32 %v969, 0.0
    %v982 = vmax.f32 %v974, 0.0
    %v983 = vmax.f32 %v977, 0.0
    %v984 = vpack.c.bf16 %v981, %v980
    %v985 = vpack.c.bf16 %v983, %v982
    %986 = vmatprep.subr.bf16.mxu0 0
    %987 = vmatpush1.bf16.msra.mxu0 0
    %988 = vmatprep.subr.bf16.mxu0 0
    %989 = vmatpush1.bf16.msra.mxu0 0
    %990 = vmatprep.subr.bf16.mxu0 0
    %991 = vmatpush1.bf16.msra.mxu0 0
    %992 = vmatprep.subr.bf16.mxu0 0
    %993 = vmatpush1.bf16.msra.mxu0 0
    %994 = vmatprep.subr.bf16.mxu0 0
    %995 = vmatpush1.bf16.msra.mxu0 0
    %996 = vmatprep.subr.bf16.mxu0 0
    %997 = vmatpush1.bf16.msra.mxu0 0
    %998 = vmatprep.subr.bf16.mxu0 0
    %999 = vmatpush1.bf16.msra.mxu0 %v985
    %1000 = vmatprep.subr.bf16.mxu0 0
    %1001 = vmatpush1.bf16.msra.mxu0 %v984
    %1002 = vmatprep.subr.bf16.mxu0 0
    %1003 = vmatpush2.bf16.msra.mxu0 0
    %1004 = vmatprep.subr.bf16.mxu0 0
    %1005 = vmatpush2.bf16.msra.mxu0 0
    %1006 = vmatprep.subr.bf16.mxu0 0
    %1007 = vmatpush2.bf16.msra.mxu0 0
    %1008 = vmatprep.subr.bf16.mxu0 0
    %1009 = vmatpush2.bf16.msra.mxu0 0
    %1010 = vmatprep.subr.bf16.mxu0 0
    %1011 = vmatpush2.bf16.msra.mxu0 0
    %1012 = vmatprep.subr.bf16.mxu0 0
    %1013 = vmatpush2.bf16.msra.mxu0 0
    %1014 = vmatprep.subr.bf16.mxu0 0
    %1015 = vmatpush2.bf16.msra.mxu0 0
    %1016 = vmatprep.subr.bf16.mxu0 0
    %1017 = vmatpush2.bf16.msra.mxu0 0
    %1018 = vmatprep.mubr.bf16.mxu0 0
    %1019 = vmatmul.mubr.bf16.gmra.mxu0 %v365
    %v1020 = vpop.f32.mrf.mxu0
    %v1021 = vadd.f32 0.0, %v1020
    %v1022 = vpop.f32.mrf.mxu0
    %v1023 = vpop.f32.mrf.mxu0
    %v1024 = vadd.f32 0.0, %v1023
    %v1025 = vpop.f32.mrf.mxu0
    %1026 = vmatprep.mubr.bf16.mxu0 0
    %1027 = vmatmul.mubr.bf16.gmra.mxu0 %v368
    %v1028 = vpop.f32.mrf.mxu0
    %v1029 = vadd.f32 0.0, %v1028
    %v1030 = vpop.f32.mrf.mxu0
    %v1031 = vpop.f32.mrf.mxu0
    %v1032 = vadd.f32 0.0, %v1031
    %v1033 = vpop.f32.mrf.mxu0
    %1034 = vmatprep.mubr.bf16.mxu0 0
    %1035 = vmatmul.mubr.bf16.gmra.mxu0 %v371
    %v1036 = vpop.f32.mrf.mxu0
    %v1037 = vadd.f32 0.0, %v1036
    %v1038 = vpop.f32.mrf.mxu0
    %v1039 = vpop.f32.mrf.mxu0
    %v1040 = vadd.f32 0.0, %v1039
    %v1041 = vpop.f32.mrf.mxu0
    %1042 = vmatprep.mubr.bf16.mxu0 0
    %1043 = vmatmul.mubr.bf16.gmra.mxu0 %v374
    %v1044 = vpop.f32.mrf.mxu0
    %v1045 = vadd.f32 0.0, %v1044
    %v1046 = vpop.f32.mrf.mxu0
    %v1047 = vpop.f32.mrf.mxu0
    %v1048 = vadd.f32 0.0, %v1047
    %v1049 = vpop.f32.mrf.mxu0
    %1050 = vmatprep.mubr.bf16.mxu0 0
    %1051 = vmatmul.mubr.bf16.gmra.mxu0 %v377
    %v1052 = vpop.f32.mrf.mxu0
    %v1053 = vadd.f32 0.0, %v1052
    %v1054 = vpop.f32.mrf.mxu0
    %v1055 = vpop.f32.mrf.mxu0
    %v1056 = vadd.f32 0.0, %v1055
    %v1057 = vpop.f32.mrf.mxu0
    %1058 = vmatprep.mubr.bf16.mxu0 0
    %1059 = vmatmul.mubr.bf16.gmra.mxu0 %v380
    %v1060 = vpop.f32.mrf.mxu0
    %v1061 = vadd.f32 0.0, %v1060
    %v1062 = vpop.f32.mrf.mxu0
    %v1063 = vpop.f32.mrf.mxu0
    %v1064 = vadd.f32 0.0, %v1063
    %v1065 = vpop.f32.mrf.mxu0
    %1066 = vmatprep.mubr.bf16.mxu0 0
    %1067 = vmatmul.mubr.bf16.gmra.mxu0 %v383
    %v1068 = vpop.f32.mrf.mxu0
    %v1069 = vadd.f32 0.0, %v1068
    %v1070 = vpop.f32.mrf.mxu0
    %v1071 = vpop.f32.mrf.mxu0
    %v1072 = vadd.f32 0.0, %v1071
    %v1073 = vpop.f32.mrf.mxu0
    %1074 = vmatprep.mubr.bf16.mxu0 0
    %1075 = vmatmul.mubr.bf16.gmra.mxu0 %v386
    %v1076 = vpop.f32.mrf.mxu0
    %v1077 = vadd.f32 0.0, %v1076
    %v1078 = vpop.f32.mrf.mxu0
    %v1079 = vpop.f32.mrf.mxu0
    %v1080 = vadd.f32 0.0, %v1079
    %v1081 = vpop.f32.mrf.mxu0
    %1082 = vdwg.mxu0
    %v1083 = vmul.f32 %v1021, %v298
    %v1084 = vmul.f32 %v1024, %v300
    %v1085 = vmul.f32 %v1029, %v302
    %v1086 = vmul.f32 %v1032, %v304
    %v1087 = vmul.f32 %v1037, %v306
    %v1088 = vmul.f32 %v1040, %v308
    %v1089 = vmul.f32 %v1045, %v310
    %v1090 = vmul.f32 %v1048, %v312
    %v1091 = vmul.f32 %v1053, %v314
    %v1092 = vmul.f32 %v1056, %v316
    %v1093 = vmul.f32 %v1061, %v318
    %v1094 = vmul.f32 %v1064, %v320
    %v1095 = vmul.f32 %v1069, %v322
    %v1096 = vmul.f32 %v1072, %v324
    %v1097 = vmul.f32 %v1077, %v326
    %v1098 = vmul.f32 %v1080, %v328
    %v1099 = vpack.c.bf16 %v1084, %v1083
    %v1100 = vpack.c.bf16 %v1086, %v1085
    %v1101 = vpack.c.bf16 %v1088, %v1087
    %v1102 = vpack.c.bf16 %v1090, %v1089
    %v1103 = vpack.c.bf16 %v1092, %v1091
    %v1104 = vpack.c.bf16 %v1094, %v1093
    %v1105 = vpack.c.bf16 %v1096, %v1095
    %v1106 = vpack.c.bf16 %v1098, %v1097
    %v1107 = vld [vmem:[#allocation2 + $0x140] sm:$0xf]
    %v1108 = vld [vmem:[#allocation2 + $0x144] sm:$0xf]
    %v1109 = vld [vmem:[#allocation2 + $0x148] sm:$0xf]
    %v1110 = vld [vmem:[#allocation2 + $0x14c] sm:$0xf]
    %v1111 = vld [vmem:[#allocation2 + $0x150] sm:$0xf]
    %v1112 = vld [vmem:[#allocation2 + $0x154] sm:$0xf]
    %v1113 = vld [vmem:[#allocation2 + $0x158] sm:$0xf]
    %v1114 = vld [vmem:[#allocation2 + $0x15c] sm:$0xf]
    %v1115 = vld [vmem:[#allocation2 + $0x160] sm:$0xf]
    %v1116 = vld [vmem:[#allocation2 + $0x164] sm:$0xf]
    %v1117 = vld [vmem:[#allocation2 + $0x168] sm:$0xf]
    %v1118 = vld [vmem:[#allocation2 + $0x16c] sm:$0xf]
    %v1119 = vld [vmem:[#allocation2 + $0x170] sm:$0xf]
    %v1120 = vld [vmem:[#allocation2 + $0x174] sm:$0xf]
    %v1121 = vld [vmem:[#allocation2 + $0x178] sm:$0xf]
    %v1122 = vld [vmem:[#allocation2 + $0x17c] sm:$0xf]
    %v1123 = vld [vmem:[#allocation2 + $0x180] sm:$0xf]
    %v1124 = vld [vmem:[#allocation2 + $0x184] sm:$0xf]
    %v1125 = vld [vmem:[#allocation2 + $0x188] sm:$0xf]
    %v1126 = vld [vmem:[#allocation2 + $0x18c] sm:$0xf]
    %v1127 = vld [vmem:[#allocation2 + $0x190] sm:$0xf]
    %v1128 = vld [vmem:[#allocation2 + $0x194] sm:$0xf]
    %v1129 = vld [vmem:[#allocation2 + $0x198] sm:$0xf]
    %v1130 = vld [vmem:[#allocation2 + $0x19c] sm:$0xf]
    %v1131 = vld [vmem:[#allocation2 + $0x1a0] sm:$0xf]
    %v1132 = vld [vmem:[#allocation2 + $0x1a4] sm:$0xf]
    %v1133 = vld [vmem:[#allocation2 + $0x1a8] sm:$0xf]
    %v1134 = vld [vmem:[#allocation2 + $0x1ac] sm:$0xf]
    %v1135 = vld [vmem:[#allocation2 + $0x1b0] sm:$0xf]
    %v1136 = vld [vmem:[#allocation2 + $0x1b4] sm:$0xf]
    %v1137 = vld [vmem:[#allocation2 + $0x1b8] sm:$0xf]
    %v1138 = vld [vmem:[#allocation2 + $0x1bc] sm:$0xf]
    %v1139 = vld [vmem:[#allocation2 + $0x1c0] sm:$0xf]
    %v1140 = vld [vmem:[#allocation2 + $0x1c4] sm:$0xf]
    %v1141 = vld [vmem:[#allocation2 + $0x1c8] sm:$0xf]
    %v1142 = vld [vmem:[#allocation2 + $0x1cc] sm:$0xf]
    %v1143 = vld [vmem:[#allocation2 + $0x1d0] sm:$0xf]
    %v1144 = vld [vmem:[#allocation2 + $0x1d4] sm:$0xf]
    %v1145 = vld [vmem:[#allocation2 + $0x1d8] sm:$0xf]
    %v1146 = vld [vmem:[#allocation2 + $0x1dc] sm:$0xf]
    %v1147 = vld [vmem:[#allocation2 + $0x1e0] sm:$0xf]
    %v1148 = vld [vmem:[#allocation2 + $0x1e4] sm:$0xf]
    %v1149 = vld [vmem:[#allocation2 + $0x1e8] sm:$0xf]
    %v1150 = vld [vmem:[#allocation2 + $0x1ec] sm:$0xf]
    %v1151 = vld [vmem:[#allocation2 + $0x1f0] sm:$0xf]
    %v1152 = vld [vmem:[#allocation2 + $0x1f4] sm:$0xf]
    %v1153 = vld [vmem:[#allocation2 + $0x1f8] sm:$0xf]
    %v1154 = vld [vmem:[#allocation2 + $0x1fc] sm:$0xf]
    %v1155 = vld [vmem:[#allocation2 + $0x200] sm:$0xf]
    %v1156 = vld [vmem:[#allocation2 + $0x204] sm:$0xf]
    %v1157 = vld [vmem:[#allocation2 + $0x208] sm:$0xf]
    %v1158 = vld [vmem:[#allocation2 + $0x20c] sm:$0xf]
    %v1159 = vld [vmem:[#allocation2 + $0x210] sm:$0xf]
    %v1160 = vld [vmem:[#allocation2 + $0x214] sm:$0xf]
    %v1161 = vld [vmem:[#allocation2 + $0x218] sm:$0xf]
    %v1162 = vld [vmem:[#allocation2 + $0x21c] sm:$0xf]
    %v1163 = vld [vmem:[#allocation2 + $0x220] sm:$0xf]
    %v1164 = vld [vmem:[#allocation2 + $0x224] sm:$0xf]
    %v1165 = vld [vmem:[#allocation2 + $0x228] sm:$0xf]
    %v1166 = vld [vmem:[#allocation2 + $0x22c] sm:$0xf]
    %v1167 = vld [vmem:[#allocation2 + $0x230] sm:$0xf]
    %v1168 = vld [vmem:[#allocation2 + $0x234] sm:$0xf]
    %v1169 = vld [vmem:[#allocation2 + $0x238] sm:$0xf]
    %v1170 = vld [vmem:[#allocation2 + $0x23c] sm:$0xf]
    %v1171 = vld [vmem:[#allocation2 + $0x240] sm:$0xf]
    %v1172 = vld [vmem:[#allocation2 + $0x244] sm:$0xf]
    %v1173 = vld [vmem:[#allocation2 + $0x248] sm:$0xf]
    %v1174 = vld [vmem:[#allocation2 + $0x24c] sm:$0xf]
    %v1175 = vld [vmem:[#allocation2 + $0x250] sm:$0xf]
    %v1176 = vld [vmem:[#allocation2 + $0x254] sm:$0xf]
    %v1177 = vld [vmem:[#allocation2 + $0x258] sm:$0xf]
    %v1178 = vld [vmem:[#allocation2 + $0x25c] sm:$0xf]
    %v1179 = vld [vmem:[#allocation2 + $0x260] sm:$0xf]
    %v1180 = vld [vmem:[#allocation2 + $0x264] sm:$0xf]
    %v1181 = vld [vmem:[#allocation2 + $0x268] sm:$0xf]
    %v1182 = vld [vmem:[#allocation2 + $0x26c] sm:$0xf]
    %v1183 = vld [vmem:[#allocation2 + $0x270] sm:$0xf]
    %v1184 = vld [vmem:[#allocation2 + $0x274] sm:$0xf]
    %v1185 = vld [vmem:[#allocation2 + $0x278] sm:$0xf]
    %v1186 = vld [vmem:[#allocation2 + $0x27c] sm:$0xf]
    %v1187 = vlaneseq
    %v1188 = vshrl.u32 %v1187, 7
    %v1189 = vsub.s32 0, %v1188
    %v1190 = vrot.slane %v353, %v1189
    %v1271 = vunpack.c.l.b16 %v1107
    %v1272 = vunpack.c.l.b16 %v1108
    %v1273 = vunpack.c.l.b16 %v1109
    %v1274 = vunpack.c.l.b16 %v1110
    %v1275 = vunpack.c.l.b16 %v1111
    %v1276 = vunpack.c.l.b16 %v1112
    %v1277 = vunpack.c.l.b16 %v1113
    %v1278 = vunpack.c.l.b16 %v1114
    %v1279 = vunpack.c.l.b16 %v1115
    %v1280 = vunpack.c.l.b16 %v1116
    %v1281 = vunpack.c.l.b16 %v1117
    %v1282 = vunpack.c.l.b16 %v1118
    %v1283 = vunpack.c.l.b16 %v1119
    %v1284 = vunpack.c.l.b16 %v1120
    %v1285 = vunpack.c.l.b16 %v1121
    %v1286 = vunpack.c.l.b16 %v1122
    %v1287 = vunpack.c.l.b16 %v1123
    %v1288 = vunpack.c.l.b16 %v1124
    %v1289 = vunpack.c.l.b16 %v1125
    %v1290 = vunpack.c.l.b16 %v1126
    %v1291 = vunpack.c.l.b16 %v1127
    %v1292 = vunpack.c.l.b16 %v1128
    %v1293 = vunpack.c.l.b16 %v1129
    %v1294 = vunpack.c.l.b16 %v1130
    %v1295 = vunpack.c.l.b16 %v1131
    %v1296 = vunpack.c.l.b16 %v1132
    %v1297 = vunpack.c.l.b16 %v1133
    %v1298 = vunpack.c.l.b16 %v1134
    %v1299 = vunpack.c.l.b16 %v1135
    %v1300 = vunpack.c.l.b16 %v1136
    %v1301 = vunpack.c.l.b16 %v1137
    %v1302 = vunpack.c.l.b16 %v1138
    %v1303 = vunpack.c.l.b16 %v1139
    %v1304 = vunpack.c.l.b16 %v1140
    %v1305 = vunpack.c.l.b16 %v1141
    %v1306 = vunpack.c.l.b16 %v1142
    %v1307 = vunpack.c.l.b16 %v1143
    %v1308 = vunpack.c.l.b16 %v1144
    %v1309 = vunpack.c.l.b16 %v1145
    %v1310 = vunpack.c.l.b16 %v1146
    %v1311 = vunpack.c.l.b16 %v1147
    %v1312 = vunpack.c.l.b16 %v1148
    %v1313 = vunpack.c.l.b16 %v1149
    %v1314 = vunpack.c.l.b16 %v1150
    %v1315 = vunpack.c.l.b16 %v1151
    %v1316 = vunpack.c.l.b16 %v1152
    %v1317 = vunpack.c.l.b16 %v1153
    %v1318 = vunpack.c.l.b16 %v1154
    %v1319 = vunpack.c.l.b16 %v1155
    %v1320 = vunpack.c.l.b16 %v1156
    %v1321 = vunpack.c.l.b16 %v1157
    %v1322 = vunpack.c.l.b16 %v1158
    %v1323 = vunpack.c.l.b16 %v1159
    %v1324 = vunpack.c.l.b16 %v1160
    %v1325 = vunpack.c.l.b16 %v1161
    %v1326 = vunpack.c.l.b16 %v1162
    %v1327 = vunpack.c.l.b16 %v1163
    %v1328 = vunpack.c.l.b16 %v1164
    %v1329 = vunpack.c.l.b16 %v1165
    %v1330 = vunpack.c.l.b16 %v1166
    %v1331 = vunpack.c.l.b16 %v1167
    %v1332 = vunpack.c.l.b16 %v1168
    %v1333 = vunpack.c.l.b16 %v1169
    %v1334 = vunpack.c.l.b16 %v1170
    %v1335 = vunpack.c.l.b16 %v1171
    %v1336 = vunpack.c.l.b16 %v1172
    %v1337 = vunpack.c.l.b16 %v1173
    %v1338 = vunpack.c.l.b16 %v1174
    %v1339 = vunpack.c.l.b16 %v1175
    %v1340 = vunpack.c.l.b16 %v1176
    %v1341 = vunpack.c.l.b16 %v1177
    %v1342 = vunpack.c.l.b16 %v1178
    %v1343 = vunpack.c.l.b16 %v1179
    %v1344 = vunpack.c.l.b16 %v1180
    %v1345 = vunpack.c.l.b16 %v1181
    %v1346 = vunpack.c.l.b16 %v1182
    %v1347 = vunpack.c.l.b16 %v1183
    %v1348 = vunpack.c.l.b16 %v1184
    %v1349 = vunpack.c.l.b16 %v1185
    %v1350 = vunpack.c.l.b16 %v1186
    %v1351 = vpack.c.b16 %v1272, %v1271
    %v1352 = vpack.c.b16 %v1274, %v1273
    %v1353 = vpack.c.b16 %v1276, %v1275
    %v1354 = vpack.c.b16 %v1278, %v1277
    %v1355 = vpack.c.b16 %v1280, %v1279
    %v1356 = vpack.c.b16 %v1282, %v1281
    %v1357 = vpack.c.b16 %v1284, %v1283
    %v1358 = vpack.c.b16 %v1286, %v1285
    %v1359 = vpack.c.b16 %v1288, %v1287
    %v1360 = vpack.c.b16 %v1290, %v1289
    %v1361 = vpack.c.b16 %v1292, %v1291
    %v1362 = vpack.c.b16 %v1294, %v1293
    %v1363 = vpack.c.b16 %v1296, %v1295
    %v1364 = vpack.c.b16 %v1298, %v1297
    %v1365 = vpack.c.b16 %v1300, %v1299
    %v1366 = vpack.c.b16 %v1302, %v1301
    %v1367 = vpack.c.b16 %v1304, %v1303
    %v1368 = vpack.c.b16 %v1306, %v1305
    %v1369 = vpack.c.b16 %v1308, %v1307
    %v1370 = vpack.c.b16 %v1310, %v1309
    %v1371 = vpack.c.b16 %v1312, %v1311
    %v1372 = vpack.c.b16 %v1314, %v1313
    %v1373 = vpack.c.b16 %v1316, %v1315
    %v1374 = vpack.c.b16 %v1318, %v1317
    %v1375 = vpack.c.b16 %v1320, %v1319
    %v1376 = vpack.c.b16 %v1322, %v1321
    %v1377 = vpack.c.b16 %v1324, %v1323
    %v1378 = vpack.c.b16 %v1326, %v1325
    %v1379 = vpack.c.b16 %v1328, %v1327
    %v1380 = vpack.c.b16 %v1330, %v1329
    %v1381 = vpack.c.b16 %v1332, %v1331
    %v1382 = vpack.c.b16 %v1334, %v1333
    %v1383 = vpack.c.b16 %v1336, %v1335
    %v1384 = vpack.c.b16 %v1338, %v1337
    %v1385 = vpack.c.b16 %v1340, %v1339
    %v1386 = vpack.c.b16 %v1342, %v1341
    %v1387 = vpack.c.b16 %v1344, %v1343
    %v1388 = vpack.c.b16 %v1346, %v1345
    %v1389 = vpack.c.b16 %v1348, %v1347
    %v1390 = vpack.c.b16 %v1350, %v1349
    %1431 = vmatprep.subr.bf16.mxu0 0
    %1432 = vmatpush1.bf16.msra.mxu0 %v1358
    %1433 = vmatprep.subr.bf16.mxu0 0
    %1434 = vmatpush1.bf16.msra.mxu0 %v1357
    %1435 = vmatprep.subr.bf16.mxu0 0
    %1436 = vmatpush1.bf16.msra.mxu0 %v1356
    %1437 = vmatprep.subr.bf16.mxu0 0
    %1438 = vmatpush1.bf16.msra.mxu0 %v1355
    %1439 = vmatprep.subr.bf16.mxu0 0
    %1440 = vmatpush1.bf16.msra.mxu0 %v1354
    %1441 = vmatprep.subr.bf16.mxu0 0
    %1442 = vmatpush1.bf16.msra.mxu0 %v1353
    %1443 = vmatprep.subr.bf16.mxu0 0
    %1444 = vmatpush1.bf16.msra.mxu0 %v1352
    %1445 = vmatprep.subr.bf16.mxu0 0
    %1446 = vmatpush1.bf16.msra.mxu0 %v1351
    %1447 = vmatprep.subr.bf16.mxu0 0
    %1448 = vmatpush2.bf16.msra.mxu0 %v1366
    %1449 = vmatprep.subr.bf16.mxu0 0
    %1450 = vmatpush2.bf16.msra.mxu0 %v1365
    %1451 = vmatprep.subr.bf16.mxu0 0
    %1452 = vmatpush2.bf16.msra.mxu0 %v1364
    %1453 = vmatprep.subr.bf16.mxu0 0
    %1454 = vmatpush2.bf16.msra.mxu0 %v1363
    %1455 = vmatprep.subr.bf16.mxu0 0
    %1456 = vmatpush2.bf16.msra.mxu0 %v1362
    %1457 = vmatprep.subr.bf16.mxu0 0
    %1458 = vmatpush2.bf16.msra.mxu0 %v1361
    %1459 = vmatprep.subr.bf16.mxu0 0
    %1460 = vmatpush2.bf16.msra.mxu0 %v1360
    %1461 = vmatprep.subr.bf16.mxu0 0
    %1462 = vmatpush2.bf16.msra.mxu0 %v1359
    %1463 = vmatprep.mubr.bf16.mxu0 %v1099
    %1464 = vmatmul.mubr.bf16.gmra.mxu0 %v984
    %v1465 = vpop.f32.mrf.mxu0
    %v1466 = vadd.f32 %v1190, %v1465
    %v1467 = vpop.f32.mrf.mxu0
    %v1468 = vpop.f32.mrf.mxu0
    %v1469 = vadd.f32 %v1190, %v1468
    %v1470 = vpop.f32.mrf.mxu0
    %1471 = vmatprep.mubr.bf16.mxu0 %v1100
    %1472 = vmatmul.mubr.bf16.gmra.mxu0 %v985
    %v1473 = vpop.f32.mrf.mxu0
    %v1474 = vadd.f32 %v1190, %v1473
    %v1475 = vpop.f32.mrf.mxu0
    %v1476 = vpop.f32.mrf.mxu0
    %v1477 = vadd.f32 %v1190, %v1476
    %v1478 = vpop.f32.mrf.mxu0
    %1479 = vdwg.mxu0
    %1480 = vmatprep.subr.bf16.mxu0 0
    %1481 = vmatpush1.bf16.msra.mxu0 %v1374
    %1482 = vmatprep.subr.bf16.mxu0 0
    %1483 = vmatpush1.bf16.msra.mxu0 %v1373
    %1484 = vmatprep.subr.bf16.mxu0 0
    %1485 = vmatpush1.bf16.msra.mxu0 %v1372
    %1486 = vmatprep.subr.bf16.mxu0 0
    %1487 = vmatpush1.bf16.msra.mxu0 %v1371
    %1488 = vmatprep.subr.bf16.mxu0 0
    %1489 = vmatpush1.bf16.msra.mxu0 %v1370
    %1490 = vmatprep.subr.bf16.mxu0 0
    %1491 = vmatpush1.bf16.msra.mxu0 %v1369
    %1492 = vmatprep.subr.bf16.mxu0 0
    %1493 = vmatpush1.bf16.msra.mxu0 %v1368
    %1494 = vmatprep.subr.bf16.mxu0 0
    %1495 = vmatpush1.bf16.msra.mxu0 %v1367
    %1496 = vmatprep.subr.bf16.mxu0 0
    %1497 = vmatpush2.bf16.msra.mxu0 %v1382
    %1498 = vmatprep.subr.bf16.mxu0 0
    %1499 = vmatpush2.bf16.msra.mxu0 %v1381
    %1500 = vmatprep.subr.bf16.mxu0 0
    %1501 = vmatpush2.bf16.msra.mxu0 %v1380
    %1502 = vmatprep.subr.bf16.mxu0 0
    %1503 = vmatpush2.bf16.msra.mxu0 %v1379
    %1504 = vmatprep.subr.bf16.mxu0 0
    %1505 = vmatpush2.bf16.msra.mxu0 %v1378
    %1506 = vmatprep.subr.bf16.mxu0 0
    %1507 = vmatpush2.bf16.msra.mxu0 %v1377
    %1508 = vmatprep.subr.bf16.mxu0 0
    %1509 = vmatpush2.bf16.msra.mxu0 %v1376
    %1510 = vmatprep.subr.bf16.mxu0 0
    %1511 = vmatpush2.bf16.msra.mxu0 %v1375
    %1512 = vmatprep.mubr.bf16.mxu0 %v1103
    %1513 = vmatmul.mubr.bf16.gmra.mxu0 %v1101
    %v1514 = vpop.f32.mrf.mxu0
    %v1515 = vadd.f32 %v1466, %v1514
    %v1516 = vpop.f32.mrf.mxu0
    %v1517 = vpop.f32.mrf.mxu0
    %v1518 = vadd.f32 %v1469, %v1517
    %v1519 = vpop.f32.mrf.mxu0
    %1520 = vmatprep.mubr.bf16.mxu0 %v1104
    %1521 = vmatmul.mubr.bf16.gmra.mxu0 %v1102
    %v1522 = vpop.f32.mrf.mxu0
    %v1523 = vadd.f32 %v1474, %v1522
    %v1524 = vpop.f32.mrf.mxu0
    %v1525 = vpop.f32.mrf.mxu0
    %v1526 = vadd.f32 %v1477, %v1525
    %v1527 = vpop.f32.mrf.mxu0
    %1528 = vdwg.mxu0
    %1529 = vmatprep.subr.bf16.mxu0 0
    %1530 = vmatpush1.bf16.msra.mxu0 %v1390
    %1531 = vmatprep.subr.bf16.mxu0 0
    %1532 = vmatpush1.bf16.msra.mxu0 %v1389
    %1533 = vmatprep.subr.bf16.mxu0 0
    %1534 = vmatpush1.bf16.msra.mxu0 %v1388
    %1535 = vmatprep.subr.bf16.mxu0 0
    %1536 = vmatpush1.bf16.msra.mxu0 %v1387
    %1537 = vmatprep.subr.bf16.mxu0 0
    %1538 = vmatpush1.bf16.msra.mxu0 %v1386
    %1539 = vmatprep.subr.bf16.mxu0 0
    %1540 = vmatpush1.bf16.msra.mxu0 %v1385
    %1541 = vmatprep.subr.bf16.mxu0 0
    %1542 = vmatpush1.bf16.msra.mxu0 %v1384
    %1543 = vmatprep.subr.bf16.mxu0 0
    %1544 = vmatpush1.bf16.msra.mxu0 %v1383
    %1545 = vmatprep.subr.bf16.mxu0 0
    %1546 = vmatpush2.bf16.msra.mxu0 0
    %1547 = vmatprep.subr.bf16.mxu0 0
    %1548 = vmatpush2.bf16.msra.mxu0 0
    %1549 = vmatprep.subr.bf16.mxu0 0
    %1550 = vmatpush2.bf16.msra.mxu0 0
    %1551 = vmatprep.subr.bf16.mxu0 0
    %1552 = vmatpush2.bf16.msra.mxu0 0
    %1553 = vmatprep.subr.bf16.mxu0 0
    %1554 = vmatpush2.bf16.msra.mxu0 0
    %1555 = vmatprep.subr.bf16.mxu0 0
    %1556 = vmatpush2.bf16.msra.mxu0 0
    %1557 = vmatprep.subr.bf16.mxu0 0
    %1558 = vmatpush2.bf16.msra.mxu0 0
    %1559 = vmatprep.subr.bf16.mxu0 0
    %1560 = vmatpush2.bf16.msra.mxu0 0
    %1561 = vmatprep.mubr.bf16.mxu0 0
    %1562 = vmatmul.mubr.bf16.gmra.mxu0 %v1105
    %v1563 = vpop.f32.mrf.mxu0
    %v1564 = vadd.f32 %v1515, %v1563
    %v1565 = vpop.f32.mrf.mxu0
    %v1566 = vpop.f32.mrf.mxu0
    %v1567 = vadd.f32 %v1518, %v1566
    %v1568 = vpop.f32.mrf.mxu0
    %1569 = vmatprep.mubr.bf16.mxu0 0
    %1570 = vmatmul.mubr.bf16.gmra.mxu0 %v1106
    %v1571 = vpop.f32.mrf.mxu0
    %v1572 = vadd.f32 %v1523, %v1571
    %v1573 = vpop.f32.mrf.mxu0
    %v1574 = vpop.f32.mrf.mxu0
    %v1575 = vadd.f32 %v1526, %v1574
    %v1576 = vpop.f32.mrf.mxu0
    %1577 = vdwg.mxu0
    %v1578 = vpack.c.bf16 %v1567, %v1564
    %v1579 = vpack.c.bf16 %v1575, %v1572
    %v1581 = vsel %vm232, %v351, 0
    %1583 = vmatprep.subr.bf16.mxu0 0
    %1584 = vmatpush1.bf16.msra.mxu0 0
    %1585 = vmatprep.subr.bf16.mxu0 0
    %1586 = vmatpush1.bf16.msra.mxu0 0
    %1587 = vmatprep.subr.bf16.mxu0 0
    %1588 = vmatpush1.bf16.msra.mxu0 0
    %1589 = vmatprep.subr.bf16.mxu0 0
    %1590 = vmatpush1.bf16.msra.mxu0 0
    %1591 = vmatprep.subr.bf16.mxu0 0
    %1592 = vmatpush1.bf16.msra.mxu0 0
    %1593 = vmatprep.subr.bf16.mxu0 0
    %1594 = vmatpush1.bf16.msra.mxu0 0
    %1595 = vmatprep.subr.bf16.mxu0 0
    %1596 = vmatpush1.bf16.msra.mxu0 %v1579
    %1597 = vmatprep.subr.bf16.mxu0 0
    %1598 = vmatpush1.bf16.msra.mxu0 %v1578
    %1599 = vmatprep.subr.bf16.mxu0 0
    %1600 = vmatpush2.bf16.msra.mxu0 0
    %1601 = vmatprep.subr.bf16.mxu0 0
    %1602 = vmatpush2.bf16.msra.mxu0 0
    %1603 = vmatprep.subr.bf16.mxu0 0
    %1604 = vmatpush2.bf16.msra.mxu0 0
    %1605 = vmatprep.subr.bf16.mxu0 0
    %1606 = vmatpush2.bf16.msra.mxu0 0
    %1607 = vmatprep.subr.bf16.mxu0 0
    %1608 = vmatpush2.bf16.msra.mxu0 0
    %1609 = vmatprep.subr.bf16.mxu0 0
    %1610 = vmatpush2.bf16.msra.mxu0 0
    %1611 = vmatprep.subr.bf16.mxu0 0
    %1612 = vmatpush2.bf16.msra.mxu0 0
    %1613 = vmatprep.subr.bf16.mxu0 0
    %1614 = vmatpush2.bf16.msra.mxu0 0
    %1615 = vmatprep.mubr.bf16.mxu0 0
    %1616 = vmatmul.mubr.bf16.gmra.mxu0 %v1581
    %v1617 = vpop.f32.mrf.mxu0
    %v1618 = vadd.f32 0.0, %v1617
    %v1619 = vpop.f32.mrf.mxu0
    %v1620 = vpop.f32.mrf.mxu0
    %v1621 = vpop.f32.mrf.mxu0
    %1622 = vdwg.mxu0
    %v1623 = vmul.f32 %v1618, %v350
    %v1624 = vlaneseq
    %v1625 = vshrl.u32 %v1624, 7
    %v1626 = vsub.s32 0, %v1625
    %v1627 = vrot.slane %v354, %v1626
    %v1628 = vmul.f32 %v1623, %v1627
    %v1629 = vlaneseq
    %v1630 = vshrl.u32 %v1629, 7
    %v1631 = vsub.s32 0, %v1630
    %v1632 = vrot.slane %v355, %v1631
    %v1633 = vadd.f32 %v1628, %v1632
    %v1634 = vpack.c.bf16 %v1633, %v1633
    %v1635 = vld [vmem:[#allocation2 + $0x280] sm:$0xf]
    %v1636 = vld [vmem:[#allocation2 + $0x284] sm:$0xf]
    %v1637 = vld [vmem:[#allocation2 + $0x288] sm:$0xf]
    %v1638 = vld [vmem:[#allocation2 + $0x28c] sm:$0xf]
    %v1639 = vld [vmem:[#allocation2 + $0x290] sm:$0xf]
    %v1640 = vld [vmem:[#allocation2 + $0x294] sm:$0xf]
    %v1641 = vld [vmem:[#allocation2 + $0x298] sm:$0xf]
    %v1642 = vld [vmem:[#allocation2 + $0x29c] sm:$0xf]
    %v1643 = vld [vmem:[#allocation2 + $0x2a0] sm:$0xf]
    %v1644 = vld [vmem:[#allocation2 + $0x2a4] sm:$0xf]
    %v1645 = vld [vmem:[#allocation2 + $0x2a8] sm:$0xf]
    %v1646 = vld [vmem:[#allocation2 + $0x2ac] sm:$0xf]
    %v1647 = vld [vmem:[#allocation2 + $0x2b0] sm:$0xf]
    %v1648 = vld [vmem:[#allocation2 + $0x2b4] sm:$0xf]
    %v1649 = vld [vmem:[#allocation2 + $0x2b8] sm:$0xf]
    %v1650 = vld [vmem:[#allocation2 + $0x2bc] sm:$0xf]
    %v1651 = vlaneseq
    %v1652 = vshrl.u32 %v1651, 7
    %v1653 = vsub.s32 0, %v1652
    %v1654 = vrot.slane %v356, %v1653
    %v1671 = vunpack.c.l.b16 %v1635
    %v1672 = vunpack.c.l.b16 %v1636
    %v1673 = vunpack.c.l.b16 %v1637
    %v1674 = vunpack.c.l.b16 %v1638
    %v1675 = vunpack.c.l.b16 %v1639
    %v1676 = vunpack.c.l.b16 %v1640
    %v1677 = vunpack.c.l.b16 %v1641
    %v1678 = vunpack.c.l.b16 %v1642
    %v1679 = vunpack.c.l.b16 %v1643
    %v1680 = vunpack.c.l.b16 %v1644
    %v1681 = vunpack.c.l.b16 %v1645
    %v1682 = vunpack.c.l.b16 %v1646
    %v1683 = vunpack.c.l.b16 %v1647
    %v1684 = vunpack.c.l.b16 %v1648
    %v1685 = vunpack.c.l.b16 %v1649
    %v1686 = vunpack.c.l.b16 %v1650
    %v1687 = vpack.c.b16 %v1672, %v1671
    %v1688 = vpack.c.b16 %v1674, %v1673
    %v1689 = vpack.c.b16 %v1676, %v1675
    %v1690 = vpack.c.b16 %v1678, %v1677
    %v1691 = vpack.c.b16 %v1680, %v1679
    %v1692 = vpack.c.b16 %v1682, %v1681
    %v1693 = vpack.c.b16 %v1684, %v1683
    %v1694 = vpack.c.b16 %v1686, %v1685
    %1703 = vmatprep.subr.bf16.mxu0 0
    %1704 = vmatpush1.bf16.msra.mxu0 %v1694
    %1705 = vmatprep.subr.bf16.mxu0 0
    %1706 = vmatpush1.bf16.msra.mxu0 %v1693
    %1707 = vmatprep.subr.bf16.mxu0 0
    %1708 = vmatpush1.bf16.msra.mxu0 %v1692
    %1709 = vmatprep.subr.bf16.mxu0 0
    %1710 = vmatpush1.bf16.msra.mxu0 %v1691
    %1711 = vmatprep.subr.bf16.mxu0 0
    %1712 = vmatpush1.bf16.msra.mxu0 %v1690
    %1713 = vmatprep.subr.bf16.mxu0 0
    %1714 = vmatpush1.bf16.msra.mxu0 %v1689
    %1715 = vmatprep.subr.bf16.mxu0 0
    %1716 = vmatpush1.bf16.msra.mxu0 %v1688
    %1717 = vmatprep.subr.bf16.mxu0 0
    %1718 = vmatpush1.bf16.msra.mxu0 %v1687
    %1719 = vmatprep.subr.bf16.mxu0 0
    %1720 = vmatpush2.bf16.msra.mxu0 0
    %1721 = vmatprep.subr.bf16.mxu0 0
    %1722 = vmatpush2.bf16.msra.mxu0 0
    %1723 = vmatprep.subr.bf16.mxu0 0
    %1724 = vmatpush2.bf16.msra.mxu0 0
    %1725 = vmatprep.subr.bf16.mxu0 0
    %1726 = vmatpush2.bf16.msra.mxu0 0
    %1727 = vmatprep.subr.bf16.mxu0 0
    %1728 = vmatpush2.bf16.msra.mxu0 0
    %1729 = vmatprep.subr.bf16.mxu0 0
    %1730 = vmatpush2.bf16.msra.mxu0 0
    %1731 = vmatprep.subr.bf16.mxu0 0
    %1732 = vmatpush2.bf16.msra.mxu0 0
    %1733 = vmatprep.subr.bf16.mxu0 0
    %1734 = vmatpush2.bf16.msra.mxu0 0
    %1735 = vmatprep.mubr.bf16.mxu0 0
    %1736 = vmatmul.mubr.bf16.gmra.mxu0 %v1634
    %v1737 = vpop.f32.mrf.mxu0
    %v1738 = vadd.f32 %v1654, %v1737
    %v1739 = vpop.f32.mrf.mxu0
    %v1740 = vpop.f32.mrf.mxu0
    %v1741 = vpop.f32.mrf.mxu0
    %1742 = vdwg.mxu0
    %v1743 = vmax.f32 %v1738, 0.0
    %v1744 = vpack.c.bf16 %v1743, %v1743
    %v1745 = vld [vmem:[#allocation2 + $0x2c0] sm:$0xf]
    %v1746 = vld [vmem:[#allocation2 + $0x2c4] sm:$0xf]
    %v1747 = vld [vmem:[#allocation2 + $0x2c8] sm:$0xf]
    %v1748 = vld [vmem:[#allocation2 + $0x2cc] sm:$0xf]
    %v1749 = vld [vmem:[#allocation2 + $0x2d0] sm:$0xf]
    %v1750 = vld [vmem:[#allocation2 + $0x2d4] sm:$0xf]
    %v1751 = vld [vmem:[#allocation2 + $0x2d8] sm:$0xf]
    %v1752 = vld [vmem:[#allocation2 + $0x2dc] sm:$0xf]
    %v1753 = vld [vmem:[#allocation2 + $0x2e0] sm:$0xf]
    %v1754 = vld [vmem:[#allocation2 + $0x2e4] sm:$0xf]
    %v1755 = vld [vmem:[#allocation2 + $0x2e8] sm:$0xf]
    %v1756 = vld [vmem:[#allocation2 + $0x2ec] sm:$0xf]
    %v1757 = vld [vmem:[#allocation2 + $0x2f0] sm:$0xf]
    %v1758 = vld [vmem:[#allocation2 + $0x2f4] sm:$0xf]
    %v1759 = vld [vmem:[#allocation2 + $0x2f8] sm:$0xf]
    %v1760 = vld [vmem:[#allocation2 + $0x2fc] sm:$0xf]
    %v1761 = vlaneseq
    %v1762 = vshrl.u32 %v1761, 7
    %v1763 = vsub.s32 0, %v1762
    %v1764 = vrot.slane %v357, %v1763
    %v1781 = vunpack.c.l.b16 %v1745
    %v1782 = vunpack.c.l.b16 %v1746
    %v1783 = vunpack.c.l.b16 %v1747
    %v1784 = vunpack.c.l.b16 %v1748
    %v1785 = vunpack.c.l.b16 %v1749
    %v1786 = vunpack.c.l.b16 %v1750
    %v1787 = vunpack.c.l.b16 %v1751
    %v1788 = vunpack.c.l.b16 %v1752
    %v1789 = vunpack.c.l.b16 %v1753
    %v1790 = vunpack.c.l.b16 %v1754
    %v1791 = vunpack.c.l.b16 %v1755
    %v1792 = vunpack.c.l.b16 %v1756
    %v1793 = vunpack.c.l.b16 %v1757
    %v1794 = vunpack.c.l.b16 %v1758
    %v1795 = vunpack.c.l.b16 %v1759
    %v1796 = vunpack.c.l.b16 %v1760
    %v1797 = vpack.c.b16 %v1782, %v1781
    %v1798 = vpack.c.b16 %v1784, %v1783
    %v1799 = vpack.c.b16 %v1786, %v1785
    %v1800 = vpack.c.b16 %v1788, %v1787
    %v1801 = vpack.c.b16 %v1790, %v1789
    %v1802 = vpack.c.b16 %v1792, %v1791
    %v1803 = vpack.c.b16 %v1794, %v1793
    %v1804 = vpack.c.b16 %v1796, %v1795
    %1813 = vmatprep.subr.bf16.mxu0 0
    %1814 = vmatpush1.bf16.msra.mxu0 %v1804
    %1815 = vmatprep.subr.bf16.mxu0 0
    %1816 = vmatpush1.bf16.msra.mxu0 %v1803
    %1817 = vmatprep.subr.bf16.mxu0 0
    %1818 = vmatpush1.bf16.msra.mxu0 %v1802
    %1819 = vmatprep.subr.bf16.mxu0 0
    %1820 = vmatpush1.bf16.msra.mxu0 %v1801
    %1821 = vmatprep.subr.bf16.mxu0 0
    %1822 = vmatpush1.bf16.msra.mxu0 %v1800
    %1823 = vmatprep.subr.bf16.mxu0 0
    %1824 = vmatpush1.bf16.msra.mxu0 %v1799
    %1825 = vmatprep.subr.bf16.mxu0 0
    %1826 = vmatpush1.bf16.msra.mxu0 %v1798
    %1827 = vmatprep.subr.bf16.mxu0 0
    %1828 = vmatpush1.bf16.msra.mxu0 %v1797
    %1829 = vmatprep.subr.bf16.mxu0 0
    %1830 = vmatpush2.bf16.msra.mxu0 0
    %1831 = vmatprep.subr.bf16.mxu0 0
    %1832 = vmatpush2.bf16.msra.mxu0 0
    %1833 = vmatprep.subr.bf16.mxu0 0
    %1834 = vmatpush2.bf16.msra.mxu0 0
    %1835 = vmatprep.subr.bf16.mxu0 0
    %1836 = vmatpush2.bf16.msra.mxu0 0
    %1837 = vmatprep.subr.bf16.mxu0 0
    %1838 = vmatpush2.bf16.msra.mxu0 0
    %1839 = vmatprep.subr.bf16.mxu0 0
    %1840 = vmatpush2.bf16.msra.mxu0 0
    %1841 = vmatprep.subr.bf16.mxu0 0
    %1842 = vmatpush2.bf16.msra.mxu0 0
    %1843 = vmatprep.subr.bf16.mxu0 0
    %1844 = vmatpush2.bf16.msra.mxu0 0
    %1845 = vmatprep.mubr.bf16.mxu0 0
    %1846 = vmatmul.mubr.bf16.gmra.mxu0 %v1744
    %v1847 = vpop.f32.mrf.mxu0
    %v1848 = vadd.f32 %v1764, %v1847
    %v1849 = vpop.f32.mrf.mxu0
    %v1850 = vpop.f32.mrf.mxu0
    %v1851 = vpop.f32.mrf.mxu0
    %1852 = vdwg.mxu0
    %1853 = vmax.xlane.f32.xlu0 %v1848
    %v1854 = vpop.xlane.xlu0 %1853
    %v1855 = vsub.f32 %v1848, %v1854
    %v1856 = vmul.f32 %v1855, 1.442695
    %v1857 = vpow.pop %v1856
    %1858 = vadd.xlane.f32.xlu0 %v1857
    %v1859 = vpop.xlane.xlu0 %1858
    %v1860 = vlog2.pop %v1859
    %v1861 = vmul.f32 %v1860, 0.6931472
    %v1862 = vadd.f32 %v1861, %v1854
    %v1863 = vsub.f32 %v1848, %v1862
    %1864 = vst [vmem:[%s5] sm:$0xff] %v1863
    // Predicated region
    $region26: #{rgcn_forward.1} parent=1 // pred_check
      _
    $region27: #{rgcn_forward.1} parent=1 // pred_check_branch
      %1866 = sbr.rel (0) target = $region29
    $region28: #{rgcn_forward.1} parent=1 // pred_region
      _
    $region29: #{rgcn_forward.1} parent=1 // pred_fallthru
      _
    // Predicated region
    $region30: #{rgcn_forward.1} parent=1 // pred_check
      _
    $region31: #{rgcn_forward.1} parent=1 // pred_check_branch
      %1868 = sbr.rel (0) target = $region33
    $region32: #{rgcn_forward.1} parent=1 // pred_region
      _
    $region33: #{rgcn_forward.1} parent=1 // pred_fallthru
      _
    %1869 = vsyncpa [#allocation3], 1

</llo_original>
